<compile_context>
chip_gen: v6e
topology: v6e:2x2x1
jax: 0.10.0
libtpu: 0.0.40
codegen_flags: <defaults>
</compile_context>

<pallas_src>
import jax
import jax.numpy as jnp
from jax import lax
from jax.experimental import pallas as pl
from jax.experimental.pallas import tpu as pltpu


def _lstm_dense_kernel(x_ref,                 # (T*Bp, F)   time-major flattened input
                       wih0e_ref,             # (F, 8H) f32: wih0 embedded in layer-0 gate cols
                       bmain_ref,             # (1, 8H) f32: [b0 | b1] interleaved
                       wblk_ref,              # (2H, 8H) bf16: [[whh0, wih1],[0, whh1]] interleaved
                       blast_ref,             # (1, 8H) f32: [0 | b1] interleaved (epilogue bias)
                       wd1_ref, bd1_ref,      # (H, D1), (1, D1)
                       wd2_ref, bd2_ref,      # (D1, D2), (1, D2)
                       wd3_ref, bd3_ref,      # (D2, P), (1, P)
                       out_ref,               # (Bp, P)
                       xproj_ref):            # scratch VMEM (T*Bp, 8H)
    B = out_ref.shape[0]                      # padded batch (sublane aligned)
    T = x_ref.shape[0] // B
    G8 = wblk_ref.shape[1]                    # 8H
    H = G8 // 8
    H2 = 2 * H

    # ---- Hoisted layer-0 input projection + biases: one big MXU matmul over
    # the whole sequence, off the serial recurrence path.
    xproj_ref[...] = (jnp.dot(x_ref[...], wih0e_ref[...],
                              preferred_element_type=jnp.float32)
                      + bmain_ref[...])

    wblk = wblk_ref[...]                      # (2H, 8H) bf16, held in vregs

    def gates_update(fused, ccat):
        # fused: (B, 8H) pre-activations, column blocks [i0 i1 f0 f1 g0 g1 o0 o1].
        # One sigmoid over the whole slab; tanh(g) = 2*sigmoid(2g) - 1 (g cols
        # pre-scaled by 2 in the wrapper).  Carries are packed [layer0 | layer1].
        s = jax.nn.sigmoid(fused)
        i = s[:, 0 * H2:1 * H2]
        f = s[:, 1 * H2:2 * H2]
        g = 2.0 * s[:, 2 * H2:3 * H2] - 1.0
        o = s[:, 3 * H2:4 * H2]
        ccat_new = f * ccat + i * g           # (B, 2H) = [c0 | c1]
        hcat_new = o * jnp.tanh(ccat_new)     # (B, 2H) = [h0 | h1]
        return hcat_new, ccat_new

    # ---- Prologue (t = 0): zero carry, so the fused matmul vanishes and the
    # gate pre-activations are exactly xproj[0].  The layer-1 half corresponds
    # to a fictitious step "-1"; mask it back to the zero initial state.
    zero2 = jnp.zeros((B, H2), jnp.float32)
    l0_mask = (lax.broadcasted_iota(jnp.int32, (1, H2), 1) < H).astype(jnp.float32)
    hcat, ccat = gates_update(xproj_ref[pl.ds(0, B), :], zero2)
    hcat = hcat * l0_mask
    ccat = ccat * l0_mask

    # ---- Skewed main loop: iteration t does layer-0 step t and layer-1 step
    # t-1 with ONE fused bf16 MXU matmul and ONE sigmoid.
    def body(t, carry):
        hcat, ccat = carry
        start = pl.multiple_of(t * B, B)
        fused = (jnp.dot(hcat.astype(jnp.bfloat16), wblk,
                         preferred_element_type=jnp.float32)
                 + xproj_ref[pl.ds(start, B), :])
        return gates_update(fused, ccat)

    # T is small here; for larger T switch to partial unroll (e.g. unroll=8).
    hcat, ccat = lax.fori_loop(1, T, body, (hcat, ccat), unroll=True)

    # ---- Epilogue pseudo-step: layer-1 update for the last timestep (no new
    # layer-0 input; the layer-0 half of the result is discarded).
    fused = (jnp.dot(hcat.astype(jnp.bfloat16), wblk,
                     preferred_element_type=jnp.float32) + blast_ref[...])
    hcat, _ = gates_update(fused, ccat)
    h1 = hcat[:, H:H2]                        # h1(T-1), (B, H)

    # ---- Dense head on the last timestep's top-layer hidden (dropout = id).
    z1 = jax.nn.sigmoid(jnp.dot(h1, wd1_ref[...],
                                preferred_element_type=jnp.float32) + bd1_ref[...])
    z2 = jax.nn.sigmoid(jnp.dot(z1, wd2_ref[...],
                                preferred_element_type=jnp.float32) + bd2_ref[...])
    out_ref[...] = (jnp.dot(z2, wd3_ref[...],
                            preferred_element_type=jnp.float32) + bd3_ref[...])


def dto_drnn_forward(x, params):
    """x: (B, T, F) float32  ->  (B, P, 1) float32 (matches torch.unsqueeze(..., 2))."""
    B, T, F = x.shape
    H = params["whh0"].shape[0]
    P = params["wd3"].shape[1]
    G = 4 * H

    # Pad batch to the f32 sublane width so every vector op / store is full width.
    SUB = 8
    Bp = ((B + SUB - 1) // SUB) * SUB
    x_p = jnp.pad(x, ((0, Bp - B), (0, 0), (0, 0)))            # zero rows are inert
    x_flat = jnp.transpose(x_p, (1, 0, 2)).reshape(T * Bp, F)  # time-major, flattened

    def gscale(w):
        # Scale g-gate (3rd quarter) columns by 2 so tanh(g) = 2*sigmoid(2g) - 1.
        Hh = w.shape[1] // 4
        s = jnp.concatenate([jnp.ones((1, 2 * Hh), jnp.float32),
                             jnp.full((1, Hh), 2.0, jnp.float32),
                             jnp.ones((1, Hh), jnp.float32)], axis=1)
        return w * s

    def interleave(w0, w1):
        # (in,4H),(in,4H) -> (in,8H) with column blocks [i0 i1 f0 f1 g0 g1 o0 o1].
        n = w0.shape[0]
        return jnp.stack([w0.reshape(n, 4, H), w1.reshape(n, 4, H)],
                         axis=2).reshape(n, 8 * H)

    wih0 = gscale(params["wih0"]); whh0 = gscale(params["whh0"]); b0 = gscale(params["b0"])
    wih1 = gscale(params["wih1"]); whh1 = gscale(params["whh1"]); b1 = gscale(params["b1"])

    zF = jnp.zeros((F, G), jnp.float32)
    zH = jnp.zeros((H, G), jnp.float32)
    z1r = jnp.zeros((1, G), jnp.float32)

    wih0_emb = interleave(wih0, zF)                                  # (F, 8H)
    wblock = jnp.concatenate([interleave(whh0, wih1),
                              interleave(zH, whh1)], axis=0)         # (2H, 8H)
    bias_main = interleave(b0, b1)                                   # (1, 8H)
    bias_last = interleave(z1r, b1)                                  # (1, 8H)

    # bf16 operands for the recurrent MXU matmuls (accumulation stays f32).
    wblock_bf16 = wblock.astype(jnp.bfloat16)

    args = (x_flat, wih0_emb, bias_main, wblock_bf16, bias_last,
            params["wd1"], params["bd1"],
            params["wd2"], params["bd2"],
            params["wd3"], params["bd3"])

    vmem_spec = pl.BlockSpec(memory_space=pltpu.MemorySpace.VMEM)
    out = pl.pallas_call(
        _lstm_dense_kernel,
        out_shape=jax.ShapeDtypeStruct((Bp, P), jnp.float32),
        in_specs=[vmem_spec] * len(args),
        out_specs=vmem_spec,
        scratch_shapes=[pltpu.VMEM((T * Bp, 8 * H), jnp.float32)],
    )(*args)
    return out[:B, :, None]                   # drop batch padding -> (B, P, 1)


# ---------------- deterministic parameter construction ----------------

def _xavier_uniform(key, shape):
    # PyTorch xavier_uniform_ on a (fan_out, fan_in) matrix.
    fan_out, fan_in = shape
    bound = (6.0 / (fan_in + fan_out)) ** 0.5
    return jax.random.uniform(key, shape, jnp.float32, -bound, bound)


def make_params(key, feature_count, hidden, dense_sizes, pred_len):
    ks = jax.random.split(key, 7)
    H, F = hidden, feature_count
    d1, d2 = dense_sizes
    # LSTM weights in PyTorch shape (4H, in), then transposed for the kernel.
    w_ih_l0 = _xavier_uniform(ks[0], (4 * H, F))
    w_hh_l0 = _xavier_uniform(ks[1], (4 * H, H))
    w_ih_l1 = _xavier_uniform(ks[2], (4 * H, H))
    w_hh_l1 = _xavier_uniform(ks[3], (4 * H, H))
    # Dense weights in PyTorch shape (out, in).
    w1 = _xavier_uniform(ks[4], (d1, H))
    w2 = _xavier_uniform(ks[5], (d2, d1))
    w3 = _xavier_uniform(ks[6], (pred_len, d2))
    # All 1-D params (biases) are zero-initialized by init_hidden().
    return {
        "wih0": w_ih_l0.T, "whh0": w_hh_l0.T, "b0": jnp.zeros((1, 4 * H), jnp.float32),
        "wih1": w_ih_l1.T, "whh1": w_hh_l1.T, "b1": jnp.zeros((1, 4 * H), jnp.float32),
        "wd1": w1.T, "bd1": jnp.zeros((1, d1), jnp.float32),
        "wd2": w2.T, "bd2": jnp.zeros((1, d2), jnp.float32),
        "wd3": w3.T, "bd3": jnp.zeros((1, pred_len), jnp.float32),
    }


# ---------------- pure-JAX reference (for sanity check) ----------------

def reference_forward(x, p):
    B, T, F = x.shape
    H = p["whh0"].shape[0]

    def cell(xt, h, c, wih, whh, b):
        g = xt @ wih + h @ whh + b
        i = jax.nn.sigmoid(g[:, :H])
        f = jax.nn.sigmoid(g[:, H:2 * H])
        gg = jnp.tanh(g[:, 2 * H:3 * H])
        o = jax.nn.sigmoid(g[:, 3 * H:])
        c = f * c + i * gg
        return o * jnp.tanh(c), c

    def step(carry, xt):
        h0, c0, h1, c1 = carry
        h0, c0 = cell(xt, h0, c0, p["wih0"], p["whh0"], p["b0"])
        h1, c1 = cell(h0, h1, c1, p["wih1"], p["whh1"], p["b1"])
        return (h0, c0, h1, c1), None

    init = tuple(jnp.zeros((B, H), jnp.float32) for _ in range(4))
    (h0, c0, h1, c1), _ = lax.scan(step, init, jnp.transpose(x, (1, 0, 2)))
    z1 = jax.nn.sigmoid(h1 @ p["wd1"] + p["bd1"])
    z2 = jax.nn.sigmoid(z1 @ p["wd2"] + p["bd2"])
    return (z2 @ p["wd3"] + p["bd3"])[:, :, None]


if __name__ == "__main__":
    # Small shapes consistent with the module's forward: (B, T, feature_count).
    B, T = 2, 8
    feature_count = 6
    hidden = 32
    dense_sizes = [15, 15]
    pred_len = 8

    key = jax.random.PRNGKey(0)
    k_x, k_p = jax.random.split(key)
    x = jax.random.normal(k_x, (B, T, feature_count), jnp.float32)
    params = make_params(k_p, feature_count, hidden, dense_sizes, pred_len)

    out = dto_drnn_forward(x, params)
    out = jax.block_until_ready(out)

    assert out.shape == (B, pred_len, 1), out.shape
    ref = jax.block_until_ready(reference_forward(x, params))
    # Relaxed tolerance: the recurrent matmuls use bf16 operands (f32 accum)
    # and tanh(g) = 2*sigmoid(2g) - 1; observed error is O(1e-3) at these
    # shapes, well inside 2e-2.
    assert jnp.allclose(out, ref, atol=2e-2, rtol=2e-2), float(jnp.abs(out - ref).max())

    print("KERNEL_OK")
</pallas_src>

<mosaic_0001>
module attributes {stable_mosaic.version = 11 : i64} {
  func.func @_lstm_dense_kernel(%arg0: memref<64x6xf32, #tpu.memory_space<vmem>>, %arg1: memref<6x256xf32, #tpu.memory_space<vmem>>, %arg2: memref<1x256xf32, #tpu.memory_space<vmem>>, %arg3: memref<64x256xbf16, #tpu.memory_space<vmem>>, %arg4: memref<1x256xf32, #tpu.memory_space<vmem>>, %arg5: memref<32x15xf32, #tpu.memory_space<vmem>>, %arg6: memref<1x15xf32, #tpu.memory_space<vmem>>, %arg7: memref<15x15xf32, #tpu.memory_space<vmem>>, %arg8: memref<1x15xf32, #tpu.memory_space<vmem>>, %arg9: memref<15x8xf32, #tpu.memory_space<vmem>>, %arg10: memref<1x8xf32, #tpu.memory_space<vmem>>, %arg11: memref<8x8xf32, #tpu.memory_space<vmem>>, %arg12: memref<64x256xf32, #tpu.memory_space<vmem>>) attributes {dimension_semantics = [], scalar_prefetch = 0 : i64, scratch_operands = 1 : i64, tpu.core_type = #tpu.core_type<tc>} {
    %c0 = arith.constant 0 : index
    %c0_0 = arith.constant 0 : index
    %0 = vector.load %arg0[%c0, %c0_0] : memref<64x6xf32, #tpu.memory_space<vmem>>, vector<64x6xf32>
    %c0_1 = arith.constant 0 : index
    %c0_2 = arith.constant 0 : index
    %1 = vector.load %arg1[%c0_1, %c0_2] : memref<6x256xf32, #tpu.memory_space<vmem>>, vector<6x256xf32>
    %cst = arith.constant dense<0.000000e+00> : vector<64x256xf32>
    %2 = tpu.matmul %0, %1, %cst {dimension_numbers = #tpu.dot_dimension_numbers<[1], [0], [0], [1], [0, 0, 1, 1], [], []>} : vector<64x6xf32>, vector<6x256xf32>, vector<64x256xf32> -> vector<64x256xf32>
    %c0_3 = arith.constant 0 : index
    %c0_4 = arith.constant 0 : index
    %3 = vector.load %arg2[%c0_3, %c0_4] : memref<1x256xf32, #tpu.memory_space<vmem>>, vector<1x256xf32>
    %4 = vector.broadcast %3 : vector<1x256xf32> to vector<64x256xf32>
    %5 = arith.addf %2, %4 : vector<64x256xf32>
    %c0_5 = arith.constant 0 : index
    %c0_6 = arith.constant 0 : index
    %6 = vector.load %arg12[%c0_5, %c0_6] : memref<64x256xf32, #tpu.memory_space<vmem>>, vector<64x256xf32>
    tpu.vector_store %arg12[%c0_5, %c0_6], %5 {strides = array<i32>} : memref<64x256xf32, #tpu.memory_space<vmem>>, vector<64x256xf32>,
    %c0_7 = arith.constant 0 : index
    %c0_8 = arith.constant 0 : index
    %7 = vector.load %arg3[%c0_7, %c0_8] : memref<64x256xbf16, #tpu.memory_space<vmem>>, vector<64x256xbf16>
    %cst_9 = arith.constant 0.000000e+00 : f32
    %8 = vector.broadcast %cst_9 : f32 to vector<8x64xf32>
    %9 = tpu.iota {dimensions = array<i32: 1>} : vector<1x64xi32>
    %c32_i32 = arith.constant 32 : i32
    %10 = vector.broadcast %c32_i32 : i32 to vector<1x64xi32>
    %11 = arith.cmpi slt, %9, %10 : vector<1x64xi32>
    %12 = arith.extui %11 : vector<1x64xi1> to vector<1x64xi32>
    %13 = arith.sitofp %12 : vector<1x64xi32> to vector<1x64xf32>
    %c0_10 = arith.constant 0 : index
    %c0_11 = arith.constant 0 : index
    %14 = vector.load %arg12[%c0_10, %c0_11] : memref<64x256xf32, #tpu.memory_space<vmem>>, vector<8x256xf32>
    %15 = arith.negf %14 : vector<8x256xf32>
    %16 = math.exp %15 : vector<8x256xf32>
    %cst_12 = arith.constant 1.000000e+00 : f32
    %17 = vector.broadcast %cst_12 : f32 to vector<8x256xf32>
    %18 = arith.addf %17, %16 : vector<8x256xf32>
    %19 = arith.divf %17, %18 : vector<8x256xf32>
    %20 = vector.extract_strided_slice %19 {offsets = [0, 0], sizes = [8, 64], strides = [1, 1]} : vector<8x256xf32> to vector<8x64xf32>
    %21 = vector.extract_strided_slice %19 {offsets = [0, 64], sizes = [8, 64], strides = [1, 1]} : vector<8x256xf32> to vector<8x64xf32>
    %22 = vector.extract_strided_slice %19 {offsets = [0, 128], sizes = [8, 64], strides = [1, 1]} : vector<8x256xf32> to vector<8x64xf32>
    %cst_13 = arith.constant 2.000000e+00 : f32
    %23 = vector.broadcast %cst_13 : f32 to vector<8x64xf32>
    %24 = arith.mulf %23, %22 : vector<8x64xf32>
    %cst_14 = arith.constant 1.000000e+00 : f32
    %25 = vector.broadcast %cst_14 : f32 to vector<8x64xf32>
    %26 = arith.subf %24, %25 : vector<8x64xf32>
    %27 = vector.extract_strided_slice %19 {offsets = [0, 192], sizes = [8, 64], strides = [1, 1]} : vector<8x256xf32> to vector<8x64xf32>
    %28 = arith.mulf %21, %8 : vector<8x64xf32>
    %29 = arith.mulf %20, %26 : vector<8x64xf32>
    %30 = arith.addf %28, %29 : vector<8x64xf32>
    %31 = math.tanh %30 : vector<8x64xf32>
    %32 = arith.mulf %27, %31 : vector<8x64xf32>
    %33 = vector.broadcast %13 : vector<1x64xf32> to vector<8x64xf32>
    %34 = arith.mulf %32, %33 : vector<8x64xf32>
    %35 = vector.broadcast %13 : vector<1x64xf32> to vector<8x64xf32>
    %36 = arith.mulf %30, %35 : vector<8x64xf32>
    %c1_i32 = arith.constant 1 : i32
    %c8_i32 = arith.constant 8 : i32
    %37 = arith.muli %c1_i32, %c8_i32 : i32
    %38 = tpu.assume_multiple %37, 8 : i32
    %39 = arith.truncf %34 : vector<8x64xf32> to vector<8x64xbf16>
    %cst_15 = arith.constant dense<0.000000e+00> : vector<8x256xf32>
    %40 = tpu.matmul %39, %7, %cst_15 {dimension_numbers = #tpu.dot_dimension_numbers<[1], [0], [0], [1], [0, 0, 1, 1], [], []>} : vector<8x64xbf16>, vector<64x256xbf16>, vector<8x256xf32> -> vector<8x256xf32>
    %41 = arith.index_cast %38 : i32 to index
    %c0_16 = arith.constant 0 : index
    %42 = vector.load %arg12[%41, %c0_16] : memref<64x256xf32, #tpu.memory_space<vmem>>, vector<8x256xf32>
    %43 = arith.addf %40, %42 : vector<8x256xf32>
    %44 = arith.negf %43 : vector<8x256xf32>
    %45 = math.exp %44 : vector<8x256xf32>
    %cst_17 = arith.constant 1.000000e+00 : f32
    %46 = vector.broadcast %cst_17 : f32 to vector<8x256xf32>
    %47 = arith.addf %46, %45 : vector<8x256xf32>
    %48 = arith.divf %46, %47 : vector<8x256xf32>
    %49 = vector.extract_strided_slice %48 {offsets = [0, 0], sizes = [8, 64], strides = [1, 1]} : vector<8x256xf32> to vector<8x64xf32>
    %50 = vector.extract_strided_slice %48 {offsets = [0, 64], sizes = [8, 64], strides = [1, 1]} : vector<8x256xf32> to vector<8x64xf32>
    %51 = vector.extract_strided_slice %48 {offsets = [0, 128], sizes = [8, 64], strides = [1, 1]} : vector<8x256xf32> to vector<8x64xf32>
    %cst_18 = arith.constant 2.000000e+00 : f32
    %52 = vector.broadcast %cst_18 : f32 to vector<8x64xf32>
    %53 = arith.mulf %52, %51 : vector<8x64xf32>
    %cst_19 = arith.constant 1.000000e+00 : f32
    %54 = vector.broadcast %cst_19 : f32 to vector<8x64xf32>
    %55 = arith.subf %53, %54 : vector<8x64xf32>
    %56 = vector.extract_strided_slice %48 {offsets = [0, 192], sizes = [8, 64], strides = [1, 1]} : vector<8x256xf32> to vector<8x64xf32>
    %57 = arith.mulf %50, %36 : vector<8x64xf32>
    %58 = arith.mulf %49, %55 : vector<8x64xf32>
    %59 = arith.addf %57, %58 : vector<8x64xf32>
    %60 = math.tanh %59 : vector<8x64xf32>
    %61 = arith.mulf %56, %60 : vector<8x64xf32>
    %c2_i32 = arith.constant 2 : i32
    %c8_i32_20 = arith.constant 8 : i32
    %62 = arith.muli %c2_i32, %c8_i32_20 : i32
    %63 = tpu.assume_multiple %62, 8 : i32
    %64 = arith.truncf %61 : vector<8x64xf32> to vector<8x64xbf16>
    %cst_21 = arith.constant dense<0.000000e+00> : vector<8x256xf32>
    %65 = tpu.matmul %64, %7, %cst_21 {dimension_numbers = #tpu.dot_dimension_numbers<[1], [0], [0], [1], [0, 0, 1, 1], [], []>} : vector<8x64xbf16>, vector<64x256xbf16>, vector<8x256xf32> -> vector<8x256xf32>
    %66 = arith.index_cast %63 : i32 to index
    %c0_22 = arith.constant 0 : index
    %67 = vector.load %arg12[%66, %c0_22] : memref<64x256xf32, #tpu.memory_space<vmem>>, vector<8x256xf32>
    %68 = arith.addf %65, %67 : vector<8x256xf32>
    %69 = arith.negf %68 : vector<8x256xf32>
    %70 = math.exp %69 : vector<8x256xf32>
    %cst_23 = arith.constant 1.000000e+00 : f32
    %71 = vector.broadcast %cst_23 : f32 to vector<8x256xf32>
    %72 = arith.addf %71, %70 : vector<8x256xf32>
    %73 = arith.divf %71, %72 : vector<8x256xf32>
    %74 = vector.extract_strided_slice %73 {offsets = [0, 0], sizes = [8, 64], strides = [1, 1]} : vector<8x256xf32> to vector<8x64xf32>
    %75 = vector.extract_strided_slice %73 {offsets = [0, 64], sizes = [8, 64], strides = [1, 1]} : vector<8x256xf32> to vector<8x64xf32>
    %76 = vector.extract_strided_slice %73 {offsets = [0, 128], sizes = [8, 64], strides = [1, 1]} : vector<8x256xf32> to vector<8x64xf32>
    %cst_24 = arith.constant 2.000000e+00 : f32
    %77 = vector.broadcast %cst_24 : f32 to vector<8x64xf32>
    %78 = arith.mulf %77, %76 : vector<8x64xf32>
    %cst_25 = arith.constant 1.000000e+00 : f32
    %79 = vector.broadcast %cst_25 : f32 to vector<8x64xf32>
    %80 = arith.subf %78, %79 : vector<8x64xf32>
    %81 = vector.extract_strided_slice %73 {offsets = [0, 192], sizes = [8, 64], strides = [1, 1]} : vector<8x256xf32> to vector<8x64xf32>
    %82 = arith.mulf %75, %59 : vector<8x64xf32>
    %83 = arith.mulf %74, %80 : vector<8x64xf32>
    %84 = arith.addf %82, %83 : vector<8x64xf32>
    %85 = math.tanh %84 : vector<8x64xf32>
    %86 = arith.mulf %81, %85 : vector<8x64xf32>
    %c3_i32 = arith.constant 3 : i32
    %c8_i32_26 = arith.constant 8 : i32
    %87 = arith.muli %c3_i32, %c8_i32_26 : i32
    %88 = tpu.assume_multiple %87, 8 : i32
    %89 = arith.truncf %86 : vector<8x64xf32> to vector<8x64xbf16>
    %cst_27 = arith.constant dense<0.000000e+00> : vector<8x256xf32>
    %90 = tpu.matmul %89, %7, %cst_27 {dimension_numbers = #tpu.dot_dimension_numbers<[1], [0], [0], [1], [0, 0, 1, 1], [], []>} : vector<8x64xbf16>, vector<64x256xbf16>, vector<8x256xf32> -> vector<8x256xf32>
    %91 = arith.index_cast %88 : i32 to index
    %c0_28 = arith.constant 0 : index
    %92 = vector.load %arg12[%91, %c0_28] : memref<64x256xf32, #tpu.memory_space<vmem>>, vector<8x256xf32>
    %93 = arith.addf %90, %92 : vector<8x256xf32>
    %94 = arith.negf %93 : vector<8x256xf32>
    %95 = math.exp %94 : vector<8x256xf32>
    %cst_29 = arith.constant 1.000000e+00 : f32
    %96 = vector.broadcast %cst_29 : f32 to vector<8x256xf32>
    %97 = arith.addf %96, %95 : vector<8x256xf32>
    %98 = arith.divf %96, %97 : vector<8x256xf32>
    %99 = vector.extract_strided_slice %98 {offsets = [0, 0], sizes = [8, 64], strides = [1, 1]} : vector<8x256xf32> to vector<8x64xf32>
    %100 = vector.extract_strided_slice %98 {offsets = [0, 64], sizes = [8, 64], strides = [1, 1]} : vector<8x256xf32> to vector<8x64xf32>
    %101 = vector.extract_strided_slice %98 {offsets = [0, 128], sizes = [8, 64], strides = [1, 1]} : vector<8x256xf32> to vector<8x64xf32>
    %cst_30 = arith.constant 2.000000e+00 : f32
    %102 = vector.broadcast %cst_30 : f32 to vector<8x64xf32>
    %103 = arith.mulf %102, %101 : vector<8x64xf32>
    %cst_31 = arith.constant 1.000000e+00 : f32
    %104 = vector.broadcast %cst_31 : f32 to vector<8x64xf32>
    %105 = arith.subf %103, %104 : vector<8x64xf32>
    %106 = vector.extract_strided_slice %98 {offsets = [0, 192], sizes = [8, 64], strides = [1, 1]} : vector<8x256xf32> to vector<8x64xf32>
    %107 = arith.mulf %100, %84 : vector<8x64xf32>
    %108 = arith.mulf %99, %105 : vector<8x64xf32>
    %109 = arith.addf %107, %108 : vector<8x64xf32>
    %110 = math.tanh %109 : vector<8x64xf32>
    %111 = arith.mulf %106, %110 : vector<8x64xf32>
    %c4_i32 = arith.constant 4 : i32
    %c8_i32_32 = arith.constant 8 : i32
    %112 = arith.muli %c4_i32, %c8_i32_32 : i32
    %113 = tpu.assume_multiple %112, 8 : i32
    %114 = arith.truncf %111 : vector<8x64xf32> to vector<8x64xbf16>
    %cst_33 = arith.constant dense<0.000000e+00> : vector<8x256xf32>
    %115 = tpu.matmul %114, %7, %cst_33 {dimension_numbers = #tpu.dot_dimension_numbers<[1], [0], [0], [1], [0, 0, 1, 1], [], []>} : vector<8x64xbf16>, vector<64x256xbf16>, vector<8x256xf32> -> vector<8x256xf32>
    %116 = arith.index_cast %113 : i32 to index
    %c0_34 = arith.constant 0 : index
    %117 = vector.load %arg12[%116, %c0_34] : memref<64x256xf32, #tpu.memory_space<vmem>>, vector<8x256xf32>
    %118 = arith.addf %115, %117 : vector<8x256xf32>
    %119 = arith.negf %118 : vector<8x256xf32>
    %120 = math.exp %119 : vector<8x256xf32>
    %cst_35 = arith.constant 1.000000e+00 : f32
    %121 = vector.broadcast %cst_35 : f32 to vector<8x256xf32>
    %122 = arith.addf %121, %120 : vector<8x256xf32>
    %123 = arith.divf %121, %122 : vector<8x256xf32>
    %124 = vector.extract_strided_slice %123 {offsets = [0, 0], sizes = [8, 64], strides = [1, 1]} : vector<8x256xf32> to vector<8x64xf32>
    %125 = vector.extract_strided_slice %123 {offsets = [0, 64], sizes = [8, 64], strides = [1, 1]} : vector<8x256xf32> to vector<8x64xf32>
    %126 = vector.extract_strided_slice %123 {offsets = [0, 128], sizes = [8, 64], strides = [1, 1]} : vector<8x256xf32> to vector<8x64xf32>
    %cst_36 = arith.constant 2.000000e+00 : f32
    %127 = vector.broadcast %cst_36 : f32 to vector<8x64xf32>
    %128 = arith.mulf %127, %126 : vector<8x64xf32>
    %cst_37 = arith.constant 1.000000e+00 : f32
    %129 = vector.broadcast %cst_37 : f32 to vector<8x64xf32>
    %130 = arith.subf %128, %129 : vector<8x64xf32>
    %131 = vector.extract_strided_slice %123 {offsets = [0, 192], sizes = [8, 64], strides = [1, 1]} : vector<8x256xf32> to vector<8x64xf32>
    %132 = arith.mulf %125, %109 : vector<8x64xf32>
    %133 = arith.mulf %124, %130 : vector<8x64xf32>
    %134 = arith.addf %132, %133 : vector<8x64xf32>
    %135 = math.tanh %134 : vector<8x64xf32>
    %136 = arith.mulf %131, %135 : vector<8x64xf32>
    %c5_i32 = arith.constant 5 : i32
    %c8_i32_38 = arith.constant 8 : i32
    %137 = arith.muli %c5_i32, %c8_i32_38 : i32
    %138 = tpu.assume_multiple %137, 8 : i32
    %139 = arith.truncf %136 : vector<8x64xf32> to vector<8x64xbf16>
    %cst_39 = arith.constant dense<0.000000e+00> : vector<8x256xf32>
    %140 = tpu.matmul %139, %7, %cst_39 {dimension_numbers = #tpu.dot_dimension_numbers<[1], [0], [0], [1], [0, 0, 1, 1], [], []>} : vector<8x64xbf16>, vector<64x256xbf16>, vector<8x256xf32> -> vector<8x256xf32>
    %141 = arith.index_cast %138 : i32 to index
    %c0_40 = arith.constant 0 : index
    %142 = vector.load %arg12[%141, %c0_40] : memref<64x256xf32, #tpu.memory_space<vmem>>, vector<8x256xf32>
    %143 = arith.addf %140, %142 : vector<8x256xf32>
    %144 = arith.negf %143 : vector<8x256xf32>
    %145 = math.exp %144 : vector<8x256xf32>
    %cst_41 = arith.constant 1.000000e+00 : f32
    %146 = vector.broadcast %cst_41 : f32 to vector<8x256xf32>
    %147 = arith.addf %146, %145 : vector<8x256xf32>
    %148 = arith.divf %146, %147 : vector<8x256xf32>
    %149 = vector.extract_strided_slice %148 {offsets = [0, 0], sizes = [8, 64], strides = [1, 1]} : vector<8x256xf32> to vector<8x64xf32>
    %150 = vector.extract_strided_slice %148 {offsets = [0, 64], sizes = [8, 64], strides = [1, 1]} : vector<8x256xf32> to vector<8x64xf32>
    %151 = vector.extract_strided_slice %148 {offsets = [0, 128], sizes = [8, 64], strides = [1, 1]} : vector<8x256xf32> to vector<8x64xf32>
    %cst_42 = arith.constant 2.000000e+00 : f32
    %152 = vector.broadcast %cst_42 : f32 to vector<8x64xf32>
    %153 = arith.mulf %152, %151 : vector<8x64xf32>
    %cst_43 = arith.constant 1.000000e+00 : f32
    %154 = vector.broadcast %cst_43 : f32 to vector<8x64xf32>
    %155 = arith.subf %153, %154 : vector<8x64xf32>
    %156 = vector.extract_strided_slice %148 {offsets = [0, 192], sizes = [8, 64], strides = [1, 1]} : vector<8x256xf32> to vector<8x64xf32>
    %157 = arith.mulf %150, %134 : vector<8x64xf32>
    %158 = arith.mulf %149, %155 : vector<8x64xf32>
    %159 = arith.addf %157, %158 : vector<8x64xf32>
    %160 = math.tanh %159 : vector<8x64xf32>
    %161 = arith.mulf %156, %160 : vector<8x64xf32>
    %c6_i32 = arith.constant 6 : i32
    %c8_i32_44 = arith.constant 8 : i32
    %162 = arith.muli %c6_i32, %c8_i32_44 : i32
    %163 = tpu.assume_multiple %162, 8 : i32
    %164 = arith.truncf %161 : vector<8x64xf32> to vector<8x64xbf16>
    %cst_45 = arith.constant dense<0.000000e+00> : vector<8x256xf32>
    %165 = tpu.matmul %164, %7, %cst_45 {dimension_numbers = #tpu.dot_dimension_numbers<[1], [0], [0], [1], [0, 0, 1, 1], [], []>} : vector<8x64xbf16>, vector<64x256xbf16>, vector<8x256xf32> -> vector<8x256xf32>
    %166 = arith.index_cast %163 : i32 to index
    %c0_46 = arith.constant 0 : index
    %167 = vector.load %arg12[%166, %c0_46] : memref<64x256xf32, #tpu.memory_space<vmem>>, vector<8x256xf32>
    %168 = arith.addf %165, %167 : vector<8x256xf32>
    %169 = arith.negf %168 : vector<8x256xf32>
    %170 = math.exp %169 : vector<8x256xf32>
    %cst_47 = arith.constant 1.000000e+00 : f32
    %171 = vector.broadcast %cst_47 : f32 to vector<8x256xf32>
    %172 = arith.addf %171, %170 : vector<8x256xf32>
    %173 = arith.divf %171, %172 : vector<8x256xf32>
    %174 = vector.extract_strided_slice %173 {offsets = [0, 0], sizes = [8, 64], strides = [1, 1]} : vector<8x256xf32> to vector<8x64xf32>
    %175 = vector.extract_strided_slice %173 {offsets = [0, 64], sizes = [8, 64], strides = [1, 1]} : vector<8x256xf32> to vector<8x64xf32>
    %176 = vector.extract_strided_slice %173 {offsets = [0, 128], sizes = [8, 64], strides = [1, 1]} : vector<8x256xf32> to vector<8x64xf32>
    %cst_48 = arith.constant 2.000000e+00 : f32
    %177 = vector.broadcast %cst_48 : f32 to vector<8x64xf32>
    %178 = arith.mulf %177, %176 : vector<8x64xf32>
    %cst_49 = arith.constant 1.000000e+00 : f32
    %179 = vector.broadcast %cst_49 : f32 to vector<8x64xf32>
    %180 = arith.subf %178, %179 : vector<8x64xf32>
    %181 = vector.extract_strided_slice %173 {offsets = [0, 192], sizes = [8, 64], strides = [1, 1]} : vector<8x256xf32> to vector<8x64xf32>
    %182 = arith.mulf %175, %159 : vector<8x64xf32>
    %183 = arith.mulf %174, %180 : vector<8x64xf32>
    %184 = arith.addf %182, %183 : vector<8x64xf32>
    %185 = math.tanh %184 : vector<8x64xf32>
    %186 = arith.mulf %181, %185 : vector<8x64xf32>
    %c7_i32 = arith.constant 7 : i32
    %c8_i32_50 = arith.constant 8 : i32
    %187 = arith.muli %c7_i32, %c8_i32_50 : i32
    %188 = tpu.assume_multiple %187, 8 : i32
    %189 = arith.truncf %186 : vector<8x64xf32> to vector<8x64xbf16>
    %cst_51 = arith.constant dense<0.000000e+00> : vector<8x256xf32>
    %190 = tpu.matmul %189, %7, %cst_51 {dimension_numbers = #tpu.dot_dimension_numbers<[1], [0], [0], [1], [0, 0, 1, 1], [], []>} : vector<8x64xbf16>, vector<64x256xbf16>, vector<8x256xf32> -> vector<8x256xf32>
    %191 = arith.index_cast %188 : i32 to index
    %c0_52 = arith.constant 0 : index
    %192 = vector.load %arg12[%191, %c0_52] : memref<64x256xf32, #tpu.memory_space<vmem>>, vector<8x256xf32>
    %193 = arith.addf %190, %192 : vector<8x256xf32>
    %194 = arith.negf %193 : vector<8x256xf32>
    %195 = math.exp %194 : vector<8x256xf32>
    %cst_53 = arith.constant 1.000000e+00 : f32
    %196 = vector.broadcast %cst_53 : f32 to vector<8x256xf32>
    %197 = arith.addf %196, %195 : vector<8x256xf32>
    %198 = arith.divf %196, %197 : vector<8x256xf32>
    %199 = vector.extract_strided_slice %198 {offsets = [0, 0], sizes = [8, 64], strides = [1, 1]} : vector<8x256xf32> to vector<8x64xf32>
    %200 = vector.extract_strided_slice %198 {offsets = [0, 64], sizes = [8, 64], strides = [1, 1]} : vector<8x256xf32> to vector<8x64xf32>
    %201 = vector.extract_strided_slice %198 {offsets = [0, 128], sizes = [8, 64], strides = [1, 1]} : vector<8x256xf32> to vector<8x64xf32>
    %cst_54 = arith.constant 2.000000e+00 : f32
    %202 = vector.broadcast %cst_54 : f32 to vector<8x64xf32>
    %203 = arith.mulf %202, %201 : vector<8x64xf32>
    %cst_55 = arith.constant 1.000000e+00 : f32
    %204 = vector.broadcast %cst_55 : f32 to vector<8x64xf32>
    %205 = arith.subf %203, %204 : vector<8x64xf32>
    %206 = vector.extract_strided_slice %198 {offsets = [0, 192], sizes = [8, 64], strides = [1, 1]} : vector<8x256xf32> to vector<8x64xf32>
    %207 = arith.mulf %200, %184 : vector<8x64xf32>
    %208 = arith.mulf %199, %205 : vector<8x64xf32>
    %209 = arith.addf %207, %208 : vector<8x64xf32>
    %210 = math.tanh %209 : vector<8x64xf32>
    %211 = arith.mulf %206, %210 : vector<8x64xf32>
    %c7_i32_56 = arith.constant 7 : i32
    %212 = arith.truncf %211 : vector<8x64xf32> to vector<8x64xbf16>
    %cst_57 = arith.constant dense<0.000000e+00> : vector<8x256xf32>
    %213 = tpu.matmul %212, %7, %cst_57 {dimension_numbers = #tpu.dot_dimension_numbers<[1], [0], [0], [1], [0, 0, 1, 1], [], []>} : vector<8x64xbf16>, vector<64x256xbf16>, vector<8x256xf32> -> vector<8x256xf32>
    %c0_58 = arith.constant 0 : index
    %c0_59 = arith.constant 0 : index
    %214 = vector.load %arg4[%c0_58, %c0_59] : memref<1x256xf32, #tpu.memory_space<vmem>>, vector<1x256xf32>
    %215 = vector.broadcast %214 : vector<1x256xf32> to vector<8x256xf32>
    %216 = arith.addf %213, %215 : vector<8x256xf32>
    %217 = arith.negf %216 : vector<8x256xf32>
    %218 = math.exp %217 : vector<8x256xf32>
    %cst_60 = arith.constant 1.000000e+00 : f32
    %219 = vector.broadcast %cst_60 : f32 to vector<8x256xf32>
    %220 = arith.addf %219, %218 : vector<8x256xf32>
    %221 = arith.divf %219, %220 : vector<8x256xf32>
    %222 = vector.extract_strided_slice %221 {offsets = [0, 0], sizes = [8, 64], strides = [1, 1]} : vector<8x256xf32> to vector<8x64xf32>
    %223 = vector.extract_strided_slice %221 {offsets = [0, 64], sizes = [8, 64], strides = [1, 1]} : vector<8x256xf32> to vector<8x64xf32>
    %224 = vector.extract_strided_slice %221 {offsets = [0, 128], sizes = [8, 64], strides = [1, 1]} : vector<8x256xf32> to vector<8x64xf32>
    %cst_61 = arith.constant 2.000000e+00 : f32
    %225 = vector.broadcast %cst_61 : f32 to vector<8x64xf32>
    %226 = arith.mulf %225, %224 : vector<8x64xf32>
    %cst_62 = arith.constant 1.000000e+00 : f32
    %227 = vector.broadcast %cst_62 : f32 to vector<8x64xf32>
    %228 = arith.subf %226, %227 : vector<8x64xf32>
    %229 = vector.extract_strided_slice %221 {offsets = [0, 192], sizes = [8, 64], strides = [1, 1]} : vector<8x256xf32> to vector<8x64xf32>
    %230 = arith.mulf %223, %209 : vector<8x64xf32>
    %231 = arith.mulf %222, %228 : vector<8x64xf32>
    %232 = arith.addf %230, %231 : vector<8x64xf32>
    %233 = math.tanh %232 : vector<8x64xf32>
    %234 = arith.mulf %229, %233 : vector<8x64xf32>
    %235 = vector.extract_strided_slice %234 {offsets = [0, 32], sizes = [8, 32], strides = [1, 1]} : vector<8x64xf32> to vector<8x32xf32>
    %c0_63 = arith.constant 0 : index
    %c0_64 = arith.constant 0 : index
    %236 = vector.load %arg5[%c0_63, %c0_64] : memref<32x15xf32, #tpu.memory_space<vmem>>, vector<32x15xf32>
    %cst_65 = arith.constant dense<0.000000e+00> : vector<8x15xf32>
    %237 = tpu.matmul %235, %236, %cst_65 {dimension_numbers = #tpu.dot_dimension_numbers<[1], [0], [0], [1], [0, 0, 1, 1], [], []>} : vector<8x32xf32>, vector<32x15xf32>, vector<8x15xf32> -> vector<8x15xf32>
    %c0_66 = arith.constant 0 : index
    %c0_67 = arith.constant 0 : index
    %238 = vector.load %arg6[%c0_66, %c0_67] : memref<1x15xf32, #tpu.memory_space<vmem>>, vector<1x15xf32>
    %239 = vector.broadcast %238 : vector<1x15xf32> to vector<8x15xf32>
    %240 = arith.addf %237, %239 : vector<8x15xf32>
    %241 = arith.negf %240 : vector<8x15xf32>
    %242 = math.exp %241 : vector<8x15xf32>
    %cst_68 = arith.constant 1.000000e+00 : f32
    %243 = vector.broadcast %cst_68 : f32 to vector<8x15xf32>
    %244 = arith.addf %243, %242 : vector<8x15xf32>
    %245 = arith.divf %243, %244 : vector<8x15xf32>
    %c0_69 = arith.constant 0 : index
    %c0_70 = arith.constant 0 : index
    %246 = vector.load %arg7[%c0_69, %c0_70] : memref<15x15xf32, #tpu.memory_space<vmem>>, vector<15x15xf32>
    %cst_71 = arith.constant dense<0.000000e+00> : vector<8x15xf32>
    %247 = tpu.matmul %245, %246, %cst_71 {dimension_numbers = #tpu.dot_dimension_numbers<[1], [0], [0], [1], [0, 0, 1, 1], [], []>} : vector<8x15xf32>, vector<15x15xf32>, vector<8x15xf32> -> vector<8x15xf32>
    %c0_72 = arith.constant 0 : index
    %c0_73 = arith.constant 0 : index
    %248 = vector.load %arg8[%c0_72, %c0_73] : memref<1x15xf32, #tpu.memory_space<vmem>>, vector<1x15xf32>
    %249 = vector.broadcast %248 : vector<1x15xf32> to vector<8x15xf32>
    %250 = arith.addf %247, %249 : vector<8x15xf32>
    %251 = arith.negf %250 : vector<8x15xf32>
    %252 = math.exp %251 : vector<8x15xf32>
    %cst_74 = arith.constant 1.000000e+00 : f32
    %253 = vector.broadcast %cst_74 : f32 to vector<8x15xf32>
    %254 = arith.addf %253, %252 : vector<8x15xf32>
    %255 = arith.divf %253, %254 : vector<8x15xf32>
    %c0_75 = arith.constant 0 : index
    %c0_76 = arith.constant 0 : index
    %256 = vector.load %arg9[%c0_75, %c0_76] : memref<15x8xf32, #tpu.memory_space<vmem>>, vector<15x8xf32>
    %cst_77 = arith.constant dense<0.000000e+00> : vector<8x8xf32>
    %257 = tpu.matmul %255, %256, %cst_77 {dimension_numbers = #tpu.dot_dimension_numbers<[1], [0], [0], [1], [0, 0, 1, 1], [], []>} : vector<8x15xf32>, vector<15x8xf32>, vector<8x8xf32> -> vector<8x8xf32>
    %c0_78 = arith.constant 0 : index
    %c0_79 = arith.constant 0 : index
    %258 = vector.load %arg10[%c0_78, %c0_79] : memref<1x8xf32, #tpu.memory_space<vmem>>, vector<1x8xf32>
    %259 = vector.broadcast %258 : vector<1x8xf32> to vector<8x8xf32>
    %260 = arith.addf %257, %259 : vector<8x8xf32>
    %c0_80 = arith.constant 0 : index
    %c0_81 = arith.constant 0 : index
    %261 = vector.load %arg11[%c0_80, %c0_81] : memref<8x8xf32, #tpu.memory_space<vmem>>, vector<8x8xf32>
    tpu.vector_store %arg11[%c0_80, %c0_81], %260 {strides = array<i32>} : memref<8x8xf32, #tpu.memory_space<vmem>>, vector<8x8xf32>,
    return
  }
}

</mosaic_0001>

<llo_original>
// kernel: tpu_custom_call.1
$region0: #{tpu_custom_call.1}
  #allocation0 [shape = 'u32[]', space=smem, size = 0x4, offset = 0x4, fixed_abs, tag = 'smem constant byte address 0x4 - core index']
  #allocation1 [shape = 'u32[144,128]{1,0:T(1,128)}', space=vmem, size = 0x12000, scoped, tag = 'internal scratch']
  #allocation2 [shape = 'f32[64,256]{1,0:T(8,128)}', space=vmem, size = 0x10000, scoped, tag = 'scratch operand']
  %s0 = inlined_call_operand.vmem [shape: f32[64,6], index: 0, kind: input, shape index: {}]
  %s1 = inlined_call_operand.vmem [shape: f32[6,256], index: 1, kind: input, shape index: {}]
  %s2 = inlined_call_operand.vmem [shape: f32[1,256], index: 2, kind: input, shape index: {}]
  %s3 = inlined_call_operand.vmem [shape: bf16[64,256], index: 3, kind: input, shape index: {}]
  %s4 = inlined_call_operand.vmem [shape: f32[1,256], index: 4, kind: input, shape index: {}]
  %s5 = inlined_call_operand.vmem [shape: f32[32,15], index: 5, kind: input, shape index: {}]
  %s6 = inlined_call_operand.vmem [shape: f32[1,15], index: 6, kind: input, shape index: {}]
  %s7 = inlined_call_operand.vmem [shape: f32[15,15], index: 7, kind: input, shape index: {}]
  %s8 = inlined_call_operand.vmem [shape: f32[1,15], index: 8, kind: input, shape index: {}]
  %s9 = inlined_call_operand.vmem [shape: f32[15,8], index: 9, kind: input, shape index: {}]
  %s10 = inlined_call_operand.vmem [shape: f32[1,8], index: 10, kind: input, shape index: {}]
  %s11 = inlined_call_operand.hbm [shape: f32[8,8], index: 11, kind: output, shape index: {}]
  %s12 = sld [smem:[#allocation0]]
  $region54: #{tpu_custom_call.1} parent=0
    _
  %s14 = ssub.s32 1, %s12
  %s15 = scalar_select 0, %s14, %s12
  $region1: #{tpu_custom_call.1} parent=0
    #allocation3 [shape = 'u8[4096]{0}', space=vmem, size = 0x1000, scoped, tag = 'output window, operand 0, single buffered']
    #allocation4 [shape = 's32[1]{0}', space=sflag, size = 0x4, scoped, tag = 'scoped memory for tpu_custom_call.1']
    %16 = vsyncpa [#allocation4], 0
    // Predicated region
    $region2: #{tpu_custom_call.1} parent=1 // pred_check
      _
    $region3: #{tpu_custom_call.1} parent=1 // pred_check_branch
      %18 = sbr.rel (0) target = $region5
    $region4: #{tpu_custom_call.1} parent=1 // pred_region
      _
    $region5: #{tpu_custom_call.1} parent=1 // pred_fallthru
      _
    // Predicated region
    $region6: #{tpu_custom_call.1} parent=1 // pred_check
      _
    $region7: #{tpu_custom_call.1} parent=1 // pred_check_branch
      %20 = sbr.rel (0) target = $region9
    $region8: #{tpu_custom_call.1} parent=1 // pred_region
      _
    $region9: #{tpu_custom_call.1} parent=1 // pred_fallthru
      _
    // Predicated region
    $region10: #{tpu_custom_call.1} parent=1 // pred_check
      _
    $region11: #{tpu_custom_call.1} parent=1 // pred_check_branch
      %22 = sbr.rel (0) target = $region13
    $region12: #{tpu_custom_call.1} parent=1 // pred_region
      _
    $region13: #{tpu_custom_call.1} parent=1 // pred_fallthru
      _
    // Predicated region
    $region14: #{tpu_custom_call.1} parent=1 // pred_check
      _
    $region15: #{tpu_custom_call.1} parent=1 // pred_check_branch
      %24 = sbr.rel (0) target = $region17
    $region16: #{tpu_custom_call.1} parent=1 // pred_region
      _
    $region17: #{tpu_custom_call.1} parent=1 // pred_fallthru
      _
    // Predicated region
    $region18: #{tpu_custom_call.1} parent=1 // pred_check
      _
    $region19: #{tpu_custom_call.1} parent=1 // pred_check_branch
      %26 = sbr.rel (0) target = $region21
    $region20: #{tpu_custom_call.1} parent=1 // pred_region
      _
    $region21: #{tpu_custom_call.1} parent=1 // pred_fallthru
      _
    // Predicated region
    $region22: #{tpu_custom_call.1} parent=1 // pred_check
      _
    $region23: #{tpu_custom_call.1} parent=1 // pred_check_branch
      %28 = sbr.rel (0) target = $region25
    $region24: #{tpu_custom_call.1} parent=1 // pred_region
      _
    $region25: #{tpu_custom_call.1} parent=1 // pred_fallthru
      _
    // Predicated region
    $region26: #{tpu_custom_call.1} parent=1 // pred_check
      _
    $region27: #{tpu_custom_call.1} parent=1 // pred_check_branch
      %30 = sbr.rel (0) target = $region29
    $region28: #{tpu_custom_call.1} parent=1 // pred_region
      _
    $region29: #{tpu_custom_call.1} parent=1 // pred_fallthru
      _
    // Predicated region
    $region30: #{tpu_custom_call.1} parent=1 // pred_check
      _
    $region31: #{tpu_custom_call.1} parent=1 // pred_check_branch
      %32 = sbr.rel (0) target = $region33
    $region32: #{tpu_custom_call.1} parent=1 // pred_region
      _
    $region33: #{tpu_custom_call.1} parent=1 // pred_fallthru
      _
    // Predicated region
    $region34: #{tpu_custom_call.1} parent=1 // pred_check
      _
    $region35: #{tpu_custom_call.1} parent=1 // pred_check_branch
      %34 = sbr.rel (0) target = $region37
    $region36: #{tpu_custom_call.1} parent=1 // pred_region
      _
    $region37: #{tpu_custom_call.1} parent=1 // pred_fallthru
      _
    // Predicated region
    $region38: #{tpu_custom_call.1} parent=1 // pred_check
      _
    $region39: #{tpu_custom_call.1} parent=1 // pred_check_branch
      %36 = sbr.rel (0) target = $region41
    $region40: #{tpu_custom_call.1} parent=1 // pred_region
      _
    $region41: #{tpu_custom_call.1} parent=1 // pred_fallthru
      _
    // Predicated region
    $region42: #{tpu_custom_call.1} parent=1 // pred_check
      _
    $region43: #{tpu_custom_call.1} parent=1 // pred_check_branch
      %38 = sbr.rel (0) target = $region45
    $region44: #{tpu_custom_call.1} parent=1 // pred_region
      _
    $region45: #{tpu_custom_call.1} parent=1 // pred_fallthru
      _
    %v40 = vld [vmem:[%s0] sm:$0xff]
    %v41 = vld [vmem:[%s0 + $0x8] sm:$0xff]
    %v42 = vld [vmem:[%s0 + $0x10] sm:$0xff]
    %v43 = vld [vmem:[%s0 + $0x18] sm:$0xff]
    %v44 = vld [vmem:[%s0 + $0x20] sm:$0xff]
    %v45 = vld [vmem:[%s0 + $0x28] sm:$0xff]
    %v46 = vld [vmem:[%s0 + $0x30] sm:$0xff]
    %v47 = vld [vmem:[%s0 + $0x38] sm:$0xff]
    %v48 = vld [vmem:[%s1] sm:$0x3f]
    %v49 = vld [vmem:[%s1 + $0x8] sm:$0x3f]
    %v50 = vld [vmem:[%s2] sm:$0x3]
    %v52 = vlaneseq
    %v53 = vshrl.u32 %v52, 7
    %v54 = vsub.s32 0, %v53
    %v55 = vrot.slane %v50, %v54
    %v56 = vlaneseq
    %v57 = vshrl.u32 %v56, 7
    %v58 = vsub.s32 1, %v57
    %v59 = vrot.slane %v50, %v58
    %vm62 = vcmask 48128
    %v64 = vsel %vm62, %v40, 0
    %v67 = vsel %vm62, %v41, 0
    %v70 = vsel %vm62, %v42, 0
    %v73 = vsel %vm62, %v43, 0
    %v76 = vsel %vm62, %v44, 0
    %v79 = vsel %vm62, %v45, 0
    %v82 = vsel %vm62, %v46, 0
    %v85 = vsel %vm62, %v47, 0
    %vm87 = vcmask 1045504
    %v89 = vsel %vm87, %v48, 0
    %v92 = vsel %vm87, %v49, 0
    %94 = vmatprep.subr.mxu0 0.0
    %95 = vmatpush1.msra.mxu0 0.0
    %96 = vmatprep.subr.mxu0 0.0
    %97 = vmatpush1.msra.mxu0 0.0
    %98 = vmatprep.subr.mxu0 0.0
    %99 = vmatpush1.msra.mxu0 0.0
    %100 = vmatprep.subr.mxu0 0.0
    %101 = vmatpush1.msra.mxu0 0.0
    %102 = vmatprep.subr.mxu0 0.0
    %103 = vmatpush1.msra.mxu0 0.0
    %104 = vmatprep.subr.mxu0 0.0
    %105 = vmatpush1.msra.mxu0 0.0
    %106 = vmatprep.subr.mxu0 0.0
    %107 = vmatpush1.msra.mxu0 0.0
    %108 = vmatprep.subr.mxu0 0.0
    %109 = vmatpush1.msra.mxu0 0.0
    %110 = vmatprep.subr.mxu0 0.0
    %111 = vmatpush1.msra.mxu0 0.0
    %112 = vmatprep.subr.mxu0 0.0
    %113 = vmatpush1.msra.mxu0 0.0
    %114 = vmatprep.subr.mxu0 0.0
    %115 = vmatpush1.msra.mxu0 0.0
    %116 = vmatprep.subr.mxu0 0.0
    %117 = vmatpush1.msra.mxu0 0.0
    %118 = vmatprep.subr.mxu0 0.0
    %119 = vmatpush1.msra.mxu0 0.0
    %120 = vmatprep.subr.mxu0 0.0
    %121 = vmatpush1.msra.mxu0 0.0
    %122 = vmatprep.subr.mxu0 0.0
    %123 = vmatpush1.msra.mxu0 0.0
    %124 = vmatprep.subr.mxu0 %v92
    %125 = vmatpush1.msra.mxu0 %v89
    %126 = vmatprep.subr.mxu0 0.0
    %127 = vmatpush2.msra.mxu0 0.0
    %128 = vmatprep.subr.mxu0 0.0
    %129 = vmatpush2.msra.mxu0 0.0
    %130 = vmatprep.subr.mxu0 0.0
    %131 = vmatpush2.msra.mxu0 0.0
    %132 = vmatprep.subr.mxu0 0.0
    %133 = vmatpush2.msra.mxu0 0.0
    %134 = vmatprep.subr.mxu0 0.0
    %135 = vmatpush2.msra.mxu0 0.0
    %136 = vmatprep.subr.mxu0 0.0
    %137 = vmatpush2.msra.mxu0 0.0
    %138 = vmatprep.subr.mxu0 0.0
    %139 = vmatpush2.msra.mxu0 0.0
    %140 = vmatprep.subr.mxu0 0.0
    %141 = vmatpush2.msra.mxu0 0.0
    %142 = vmatprep.subr.mxu0 0.0
    %143 = vmatpush2.msra.mxu0 0.0
    %144 = vmatprep.subr.mxu0 0.0
    %145 = vmatpush2.msra.mxu0 0.0
    %146 = vmatprep.subr.mxu0 0.0
    %147 = vmatpush2.msra.mxu0 0.0
    %148 = vmatprep.subr.mxu0 0.0
    %149 = vmatpush2.msra.mxu0 0.0
    %150 = vmatprep.subr.mxu0 0.0
    %151 = vmatpush2.msra.mxu0 0.0
    %152 = vmatprep.subr.mxu0 0.0
    %153 = vmatpush2.msra.mxu0 0.0
    %154 = vmatprep.subr.mxu0 0.0
    %155 = vmatpush2.msra.mxu0 0.0
    %156 = vmatprep.subr.mxu0 0.0
    %157 = vmatpush2.msra.mxu0 0.0
    %158 = vmatprep.mubr.f32.mxu0 0.0
    %159 = vmatmul.mubr.f32.gmra.mxu0 %v64
    %v160 = vpop.f32.mrf.mxu0
    %v161 = vadd.f32 %v55, %v160
    %v162 = vpop.f32.mrf.mxu0
    %v163 = vadd.f32 %v59, %v162
    %164 = vmatprep.mubr.f32.mxu0 0.0
    %165 = vmatmul.mubr.f32.gmra.mxu0 %v67
    %v166 = vpop.f32.mrf.mxu0
    %v167 = vadd.f32 %v55, %v166
    %v168 = vpop.f32.mrf.mxu0
    %v169 = vadd.f32 %v59, %v168
    %170 = vmatprep.mubr.f32.mxu0 0.0
    %171 = vmatmul.mubr.f32.gmra.mxu0 %v70
    %v172 = vpop.f32.mrf.mxu0
    %v173 = vadd.f32 %v55, %v172
    %v174 = vpop.f32.mrf.mxu0
    %v175 = vadd.f32 %v59, %v174
    %176 = vmatprep.mubr.f32.mxu0 0.0
    %177 = vmatmul.mubr.f32.gmra.mxu0 %v73
    %v178 = vpop.f32.mrf.mxu0
    %v179 = vadd.f32 %v55, %v178
    %v180 = vpop.f32.mrf.mxu0
    %v181 = vadd.f32 %v59, %v180
    %182 = vmatprep.mubr.f32.mxu0 0.0
    %183 = vmatmul.mubr.f32.gmra.mxu0 %v76
    %v184 = vpop.f32.mrf.mxu0
    %v185 = vadd.f32 %v55, %v184
    %v186 = vpop.f32.mrf.mxu0
    %v187 = vadd.f32 %v59, %v186
    %188 = vmatprep.mubr.f32.mxu0 0.0
    %189 = vmatmul.mubr.f32.gmra.mxu0 %v79
    %v190 = vpop.f32.mrf.mxu0
    %v191 = vadd.f32 %v55, %v190
    %v192 = vpop.f32.mrf.mxu0
    %v193 = vadd.f32 %v59, %v192
    %194 = vmatprep.mubr.f32.mxu0 0.0
    %195 = vmatmul.mubr.f32.gmra.mxu0 %v82
    %v196 = vpop.f32.mrf.mxu0
    %v197 = vadd.f32 %v55, %v196
    %v198 = vpop.f32.mrf.mxu0
    %v199 = vadd.f32 %v59, %v198
    %200 = vmatprep.mubr.f32.mxu0 0.0
    %201 = vmatmul.mubr.f32.gmra.mxu0 %v85
    %v202 = vpop.f32.mrf.mxu0
    %v203 = vadd.f32 %v55, %v202
    %v204 = vpop.f32.mrf.mxu0
    %v205 = vadd.f32 %v59, %v204
    %206 = vdwg.mxu0
    %207 = vst [vmem:[#allocation2] sm:$0xff] %v161
    %208 = vst [vmem:[#allocation2 + $0x8] sm:$0xff] %v163
    %209 = vst [vmem:[#allocation2 + $0x10] sm:$0xff] %v167
    %210 = vst [vmem:[#allocation2 + $0x18] sm:$0xff] %v169
    %211 = vst [vmem:[#allocation2 + $0x20] sm:$0xff] %v173
    %212 = vst [vmem:[#allocation2 + $0x28] sm:$0xff] %v175
    %213 = vst [vmem:[#allocation2 + $0x30] sm:$0xff] %v179
    %214 = vst [vmem:[#allocation2 + $0x38] sm:$0xff] %v181
    %215 = vst [vmem:[#allocation2 + $0x40] sm:$0xff] %v185
    %216 = vst [vmem:[#allocation2 + $0x48] sm:$0xff] %v187
    %217 = vst [vmem:[#allocation2 + $0x50] sm:$0xff] %v191
    %218 = vst [vmem:[#allocation2 + $0x58] sm:$0xff] %v193
    %219 = vst [vmem:[#allocation2 + $0x60] sm:$0xff] %v197
    %220 = vst [vmem:[#allocation2 + $0x68] sm:$0xff] %v199
    %221 = vst [vmem:[#allocation2 + $0x70] sm:$0xff] %v203
    %222 = vst [vmem:[#allocation2 + $0x78] sm:$0xff] %v205
    %v223 = vld [vmem:[%s3] sm:$0xff]
    %v224 = vld [vmem:[%s3 + $0x8] sm:$0xff]
    %v225 = vld [vmem:[%s3 + $0x10] sm:$0xff]
    %v226 = vld [vmem:[%s3 + $0x18] sm:$0xff]
    %v227 = vld [vmem:[%s3 + $0x20] sm:$0xff]
    %v228 = vld [vmem:[%s3 + $0x28] sm:$0xff]
    %v229 = vld [vmem:[%s3 + $0x30] sm:$0xff]
    %v230 = vld [vmem:[%s3 + $0x38] sm:$0xff]
    %v231 = vlaneseq
    %v232 = vand.u32 %v231, 127
    %vm233 = vcmp.lt.s32.totalorder %v232, 32
    %v234 = vsel %vm233, 1, 0
    %v235 = vcvt.s32.f32 %v234
    %v236 = vld [vmem:[#allocation2] sm:$0xff]
    %v237 = vld [vmem:[#allocation2 + $0x8] sm:$0xff]
    %v238 = vxor.u32 %v236, 2147483648
    %v239 = vxor.u32 %v237, 2147483648
    %v240 = vmul.f32 %v238, 1.442695
    %v241 = vpow.pop %v240
    %v242 = vmul.f32 %v239, 1.442695
    %v243 = vpow.pop %v242
    %v244 = vadd.f32 %v241, 1.0
    %v245 = vadd.f32 %v243, 1.0
    %v246 = vrcp.pop %v244
    %v247 = vmul.f32 1.0, %v246
    %v248 = vrcp.pop %v245
    %v249 = vmul.f32 1.0, %v248
    %v250 = vmul.f32 %v249, 2.0
    %v251 = vsub.f32 %v250, 1.0
    %v252 = vmul.f32 %v247, 0.0
    %v253 = vmul.f32 %v247, %v251
    %255 = vrot.lane.b32.xlu0 %v253, 64
    %v256 = vpop.permute.xlu0 %255
    %v258 = vadd.f32 %v252, %v256
    %v259 = vtanh.pop %v258
    %v260 = vmul.f32 %v249, %v259
    %262 = vrot.lane.b32.xlu0 %v235, 64
    %v263 = vpop.permute.xlu0 %262
    %v265 = vmul.f32 %v260, %v263
    %v266 = vmul.f32 %v258, %v263
    %v267 = vpack.c.bf16 %v265, %v265
    %s268 = smul.u32 1, 2
    %s269 = smul.addr %s268, 8
    %s270 = scalar_lea.vmem [#allocation2], %s269
    %v271 = vld [vmem:[%s270] sm:$0xff]
    %v272 = vld [vmem:[%s270 + $0x8] sm:$0xff]
    %274 = vrot.lane.b32.xlu0 %v267, 64
    %v275 = vpop.permute.xlu0 %274
    %v284 = vunpack.c.l.b16 %v223
    %v285 = vunpack.c.h.b16 %v223
    %v286 = vunpack.c.l.b16 %v224
    %v287 = vunpack.c.h.b16 %v224
    %v288 = vunpack.c.l.b16 %v225
    %v289 = vunpack.c.h.b16 %v225
    %v290 = vunpack.c.l.b16 %v226
    %v291 = vunpack.c.h.b16 %v226
    %v292 = vunpack.c.l.b16 %v227
    %v293 = vunpack.c.h.b16 %v227
    %v294 = vunpack.c.l.b16 %v228
    %v295 = vunpack.c.h.b16 %v228
    %v296 = vunpack.c.l.b16 %v229
    %v297 = vunpack.c.h.b16 %v229
    %v298 = vunpack.c.l.b16 %v230
    %v299 = vunpack.c.h.b16 %v230
    %v300 = vpack.c.b16 %v286, %v284
    %v301 = vpack.c.b16 %v287, %v285
    %v302 = vpack.c.b16 %v290, %v288
    %v303 = vpack.c.b16 %v291, %v289
    %v304 = vpack.c.b16 %v294, %v292
    %v305 = vpack.c.b16 %v295, %v293
    %v306 = vpack.c.b16 %v298, %v296
    %v307 = vpack.c.b16 %v299, %v297
    %vm316 = vcmask 523264
    %v318 = vsel %vm316, %v275, 0
    %320 = vmatprep.subr.bf16.mxu0 0
    %321 = vmatpush1.bf16.msra.mxu0 0
    %322 = vmatprep.subr.bf16.mxu0 0
    %323 = vmatpush1.bf16.msra.mxu0 0
    %324 = vmatprep.subr.bf16.mxu0 0
    %325 = vmatpush1.bf16.msra.mxu0 0
    %326 = vmatprep.subr.bf16.mxu0 0
    %327 = vmatpush1.bf16.msra.mxu0 0
    %328 = vmatprep.subr.bf16.mxu0 %v307
    %329 = vmatpush1.bf16.msra.mxu0 %v306
    %330 = vmatprep.subr.bf16.mxu0 %v305
    %331 = vmatpush1.bf16.msra.mxu0 %v304
    %332 = vmatprep.subr.bf16.mxu0 %v303
    %333 = vmatpush1.bf16.msra.mxu0 %v302
    %334 = vmatprep.subr.bf16.mxu0 %v301
    %335 = vmatpush1.bf16.msra.mxu0 %v300
    %336 = vmatprep.subr.bf16.mxu0 0
    %337 = vmatpush2.bf16.msra.mxu0 0
    %338 = vmatprep.subr.bf16.mxu0 0
    %339 = vmatpush2.bf16.msra.mxu0 0
    %340 = vmatprep.subr.bf16.mxu0 0
    %341 = vmatpush2.bf16.msra.mxu0 0
    %342 = vmatprep.subr.bf16.mxu0 0
    %343 = vmatpush2.bf16.msra.mxu0 0
    %344 = vmatprep.subr.bf16.mxu0 0
    %345 = vmatpush2.bf16.msra.mxu0 0
    %346 = vmatprep.subr.bf16.mxu0 0
    %347 = vmatpush2.bf16.msra.mxu0 0
    %348 = vmatprep.subr.bf16.mxu0 0
    %349 = vmatpush2.bf16.msra.mxu0 0
    %350 = vmatprep.subr.bf16.mxu0 0
    %351 = vmatpush2.bf16.msra.mxu0 0
    %352 = vmatprep.mubr.bf16.mxu0 0
    %353 = vmatmul.mubr.bf16.gmra.mxu0 %v318
    %v354 = vpop.f32.mrf.mxu0
    %v355 = vadd.f32 %v271, %v354
    %v356 = vpop.f32.mrf.mxu0
    %v357 = vadd.f32 %v272, %v356
    %v358 = vpop.f32.mrf.mxu0
    %v359 = vpop.f32.mrf.mxu0
    %360 = vdwg.mxu0
    %v361 = vxor.u32 %v355, 2147483648
    %v362 = vxor.u32 %v357, 2147483648
    %v363 = vmul.f32 %v361, 1.442695
    %v364 = vpow.pop %v363
    %v365 = vmul.f32 %v362, 1.442695
    %v366 = vpow.pop %v365
    %v367 = vadd.f32 %v364, 1.0
    %v368 = vadd.f32 %v366, 1.0
    %v369 = vrcp.pop %v367
    %v370 = vmul.f32 1.0, %v369
    %v371 = vrcp.pop %v368
    %v372 = vmul.f32 1.0, %v371
    %v373 = vmul.f32 %v372, 2.0
    %v374 = vsub.f32 %v373, 1.0
    %v375 = vmul.f32 %v370, %v266
    %v376 = vmul.f32 %v370, %v374
    %378 = vrot.lane.b32.xlu0 %v376, 64
    %v379 = vpop.permute.xlu0 %378
    %v381 = vadd.f32 %v375, %v379
    %v382 = vtanh.pop %v381
    %v383 = vmul.f32 %v372, %v382
    %v384 = vpack.c.bf16 %v383, %v383
    %s385 = smul.u32 2, 2
    %s386 = smul.addr %s385, 8
    %s387 = scalar_lea.vmem [#allocation2], %s386
    %v388 = vld [vmem:[%s387] sm:$0xff]
    %v389 = vld [vmem:[%s387 + $0x8] sm:$0xff]
    %391 = vrot.lane.b32.xlu0 %v384, 64
    %v392 = vpop.permute.xlu0 %391
    %v394 = vsel %vm316, %v392, 0
    %396 = vmatprep.subr.bf16.mxu0 0
    %397 = vmatpush1.bf16.msra.mxu0 0
    %398 = vmatprep.subr.bf16.mxu0 0
    %399 = vmatpush1.bf16.msra.mxu0 0
    %400 = vmatprep.subr.bf16.mxu0 0
    %401 = vmatpush1.bf16.msra.mxu0 0
    %402 = vmatprep.subr.bf16.mxu0 0
    %403 = vmatpush1.bf16.msra.mxu0 0
    %404 = vmatprep.subr.bf16.mxu0 %v307
    %405 = vmatpush1.bf16.msra.mxu0 %v306
    %406 = vmatprep.subr.bf16.mxu0 %v305
    %407 = vmatpush1.bf16.msra.mxu0 %v304
    %408 = vmatprep.subr.bf16.mxu0 %v303
    %409 = vmatpush1.bf16.msra.mxu0 %v302
    %410 = vmatprep.subr.bf16.mxu0 %v301
    %411 = vmatpush1.bf16.msra.mxu0 %v300
    %412 = vmatprep.subr.bf16.mxu0 0
    %413 = vmatpush2.bf16.msra.mxu0 0
    %414 = vmatprep.subr.bf16.mxu0 0
    %415 = vmatpush2.bf16.msra.mxu0 0
    %416 = vmatprep.subr.bf16.mxu0 0
    %417 = vmatpush2.bf16.msra.mxu0 0
    %418 = vmatprep.subr.bf16.mxu0 0
    %419 = vmatpush2.bf16.msra.mxu0 0
    %420 = vmatprep.subr.bf16.mxu0 0
    %421 = vmatpush2.bf16.msra.mxu0 0
    %422 = vmatprep.subr.bf16.mxu0 0
    %423 = vmatpush2.bf16.msra.mxu0 0
    %424 = vmatprep.subr.bf16.mxu0 0
    %425 = vmatpush2.bf16.msra.mxu0 0
    %426 = vmatprep.subr.bf16.mxu0 0
    %427 = vmatpush2.bf16.msra.mxu0 0
    %428 = vmatprep.mubr.bf16.mxu0 0
    %429 = vmatmul.mubr.bf16.gmra.mxu0 %v394
    %v430 = vpop.f32.mrf.mxu0
    %v431 = vadd.f32 %v388, %v430
    %v432 = vpop.f32.mrf.mxu0
    %v433 = vadd.f32 %v389, %v432
    %v434 = vpop.f32.mrf.mxu0
    %v435 = vpop.f32.mrf.mxu0
    %436 = vdwg.mxu0
    %v437 = vxor.u32 %v431, 2147483648
    %v438 = vxor.u32 %v433, 2147483648
    %v439 = vmul.f32 %v437, 1.442695
    %v440 = vpow.pop %v439
    %v441 = vmul.f32 %v438, 1.442695
    %v442 = vpow.pop %v441
    %v443 = vadd.f32 %v440, 1.0
    %v444 = vadd.f32 %v442, 1.0
    %v445 = vrcp.pop %v443
    %v446 = vmul.f32 1.0, %v445
    %v447 = vrcp.pop %v444
    %v448 = vmul.f32 1.0, %v447
    %v449 = vmul.f32 %v448, 2.0
    %v450 = vsub.f32 %v449, 1.0
    %v451 = vmul.f32 %v446, %v381
    %v452 = vmul.f32 %v446, %v450
    %454 = vrot.lane.b32.xlu0 %v452, 64
    %v455 = vpop.permute.xlu0 %454
    %v457 = vadd.f32 %v451, %v455
    %v458 = vtanh.pop %v457
    %v459 = vmul.f32 %v448, %v458
    %v460 = vpack.c.bf16 %v459, %v459
    %s461 = smul.u32 3, 2
    %s462 = smul.addr %s461, 8
    %s463 = scalar_lea.vmem [#allocation2], %s462
    %v464 = vld [vmem:[%s463] sm:$0xff]
    %v465 = vld [vmem:[%s463 + $0x8] sm:$0xff]
    %467 = vrot.lane.b32.xlu0 %v460, 64
    %v468 = vpop.permute.xlu0 %467
    %v470 = vsel %vm316, %v468, 0
    %472 = vmatprep.subr.bf16.mxu0 0
    %473 = vmatpush1.bf16.msra.mxu0 0
    %474 = vmatprep.subr.bf16.mxu0 0
    %475 = vmatpush1.bf16.msra.mxu0 0
    %476 = vmatprep.subr.bf16.mxu0 0
    %477 = vmatpush1.bf16.msra.mxu0 0
    %478 = vmatprep.subr.bf16.mxu0 0
    %479 = vmatpush1.bf16.msra.mxu0 0
    %480 = vmatprep.subr.bf16.mxu0 %v307
    %481 = vmatpush1.bf16.msra.mxu0 %v306
    %482 = vmatprep.subr.bf16.mxu0 %v305
    %483 = vmatpush1.bf16.msra.mxu0 %v304
    %484 = vmatprep.subr.bf16.mxu0 %v303
    %485 = vmatpush1.bf16.msra.mxu0 %v302
    %486 = vmatprep.subr.bf16.mxu0 %v301
    %487 = vmatpush1.bf16.msra.mxu0 %v300
    %488 = vmatprep.subr.bf16.mxu0 0
    %489 = vmatpush2.bf16.msra.mxu0 0
    %490 = vmatprep.subr.bf16.mxu0 0
    %491 = vmatpush2.bf16.msra.mxu0 0
    %492 = vmatprep.subr.bf16.mxu0 0
    %493 = vmatpush2.bf16.msra.mxu0 0
    %494 = vmatprep.subr.bf16.mxu0 0
    %495 = vmatpush2.bf16.msra.mxu0 0
    %496 = vmatprep.subr.bf16.mxu0 0
    %497 = vmatpush2.bf16.msra.mxu0 0
    %498 = vmatprep.subr.bf16.mxu0 0
    %499 = vmatpush2.bf16.msra.mxu0 0
    %500 = vmatprep.subr.bf16.mxu0 0
    %501 = vmatpush2.bf16.msra.mxu0 0
    %502 = vmatprep.subr.bf16.mxu0 0
    %503 = vmatpush2.bf16.msra.mxu0 0
    %504 = vmatprep.mubr.bf16.mxu0 0
    %505 = vmatmul.mubr.bf16.gmra.mxu0 %v470
    %v506 = vpop.f32.mrf.mxu0
    %v507 = vadd.f32 %v464, %v506
    %v508 = vpop.f32.mrf.mxu0
    %v509 = vadd.f32 %v465, %v508
    %v510 = vpop.f32.mrf.mxu0
    %v511 = vpop.f32.mrf.mxu0
    %512 = vdwg.mxu0
    %v513 = vxor.u32 %v507, 2147483648
    %v514 = vxor.u32 %v509, 2147483648
    %v515 = vmul.f32 %v513, 1.442695
    %v516 = vpow.pop %v515
    %v517 = vmul.f32 %v514, 1.442695
    %v518 = vpow.pop %v517
    %v519 = vadd.f32 %v516, 1.0
    %v520 = vadd.f32 %v518, 1.0
    %v521 = vrcp.pop %v519
    %v522 = vmul.f32 1.0, %v521
    %v523 = vrcp.pop %v520
    %v524 = vmul.f32 1.0, %v523
    %v525 = vmul.f32 %v524, 2.0
    %v526 = vsub.f32 %v525, 1.0
    %v527 = vmul.f32 %v522, %v457
    %v528 = vmul.f32 %v522, %v526
    %530 = vrot.lane.b32.xlu0 %v528, 64
    %v531 = vpop.permute.xlu0 %530
    %v533 = vadd.f32 %v527, %v531
    %v534 = vtanh.pop %v533
    %v535 = vmul.f32 %v524, %v534
    %v536 = vpack.c.bf16 %v535, %v535
    %s537 = smul.u32 4, 2
    %s538 = smul.addr %s537, 8
    %s539 = scalar_lea.vmem [#allocation2], %s538
    %v540 = vld [vmem:[%s539] sm:$0xff]
    %v541 = vld [vmem:[%s539 + $0x8] sm:$0xff]
    %543 = vrot.lane.b32.xlu0 %v536, 64
    %v544 = vpop.permute.xlu0 %543
    %v546 = vsel %vm316, %v544, 0
    %548 = vmatprep.subr.bf16.mxu0 0
    %549 = vmatpush1.bf16.msra.mxu0 0
    %550 = vmatprep.subr.bf16.mxu0 0
    %551 = vmatpush1.bf16.msra.mxu0 0
    %552 = vmatprep.subr.bf16.mxu0 0
    %553 = vmatpush1.bf16.msra.mxu0 0
    %554 = vmatprep.subr.bf16.mxu0 0
    %555 = vmatpush1.bf16.msra.mxu0 0
    %556 = vmatprep.subr.bf16.mxu0 %v307
    %557 = vmatpush1.bf16.msra.mxu0 %v306
    %558 = vmatprep.subr.bf16.mxu0 %v305
    %559 = vmatpush1.bf16.msra.mxu0 %v304
    %560 = vmatprep.subr.bf16.mxu0 %v303
    %561 = vmatpush1.bf16.msra.mxu0 %v302
    %562 = vmatprep.subr.bf16.mxu0 %v301
    %563 = vmatpush1.bf16.msra.mxu0 %v300
    %564 = vmatprep.subr.bf16.mxu0 0
    %565 = vmatpush2.bf16.msra.mxu0 0
    %566 = vmatprep.subr.bf16.mxu0 0
    %567 = vmatpush2.bf16.msra.mxu0 0
    %568 = vmatprep.subr.bf16.mxu0 0
    %569 = vmatpush2.bf16.msra.mxu0 0
    %570 = vmatprep.subr.bf16.mxu0 0
    %571 = vmatpush2.bf16.msra.mxu0 0
    %572 = vmatprep.subr.bf16.mxu0 0
    %573 = vmatpush2.bf16.msra.mxu0 0
    %574 = vmatprep.subr.bf16.mxu0 0
    %575 = vmatpush2.bf16.msra.mxu0 0
    %576 = vmatprep.subr.bf16.mxu0 0
    %577 = vmatpush2.bf16.msra.mxu0 0
    %578 = vmatprep.subr.bf16.mxu0 0
    %579 = vmatpush2.bf16.msra.mxu0 0
    %580 = vmatprep.mubr.bf16.mxu0 0
    %581 = vmatmul.mubr.bf16.gmra.mxu0 %v546
    %v582 = vpop.f32.mrf.mxu0
    %v583 = vadd.f32 %v540, %v582
    %v584 = vpop.f32.mrf.mxu0
    %v585 = vadd.f32 %v541, %v584
    %v586 = vpop.f32.mrf.mxu0
    %v587 = vpop.f32.mrf.mxu0
    %588 = vdwg.mxu0
    %v589 = vxor.u32 %v583, 2147483648
    %v590 = vxor.u32 %v585, 2147483648
    %v591 = vmul.f32 %v589, 1.442695
    %v592 = vpow.pop %v591
    %v593 = vmul.f32 %v590, 1.442695
    %v594 = vpow.pop %v593
    %v595 = vadd.f32 %v592, 1.0
    %v596 = vadd.f32 %v594, 1.0
    %v597 = vrcp.pop %v595
    %v598 = vmul.f32 1.0, %v597
    %v599 = vrcp.pop %v596
    %v600 = vmul.f32 1.0, %v599
    %v601 = vmul.f32 %v600, 2.0
    %v602 = vsub.f32 %v601, 1.0
    %v603 = vmul.f32 %v598, %v533
    %v604 = vmul.f32 %v598, %v602
    %606 = vrot.lane.b32.xlu0 %v604, 64
    %v607 = vpop.permute.xlu0 %606
    %v609 = vadd.f32 %v603, %v607
    %v610 = vtanh.pop %v609
    %v611 = vmul.f32 %v600, %v610
    %v612 = vpack.c.bf16 %v611, %v611
    %s613 = smul.u32 5, 2
    %s614 = smul.addr %s613, 8
    %s615 = scalar_lea.vmem [#allocation2], %s614
    %v616 = vld [vmem:[%s615] sm:$0xff]
    %v617 = vld [vmem:[%s615 + $0x8] sm:$0xff]
    %619 = vrot.lane.b32.xlu0 %v612, 64
    %v620 = vpop.permute.xlu0 %619
    %v622 = vsel %vm316, %v620, 0
    %624 = vmatprep.subr.bf16.mxu0 0
    %625 = vmatpush1.bf16.msra.mxu0 0
    %626 = vmatprep.subr.bf16.mxu0 0
    %627 = vmatpush1.bf16.msra.mxu0 0
    %628 = vmatprep.subr.bf16.mxu0 0
    %629 = vmatpush1.bf16.msra.mxu0 0
    %630 = vmatprep.subr.bf16.mxu0 0
    %631 = vmatpush1.bf16.msra.mxu0 0
    %632 = vmatprep.subr.bf16.mxu0 %v307
    %633 = vmatpush1.bf16.msra.mxu0 %v306
    %634 = vmatprep.subr.bf16.mxu0 %v305
    %635 = vmatpush1.bf16.msra.mxu0 %v304
    %636 = vmatprep.subr.bf16.mxu0 %v303
    %637 = vmatpush1.bf16.msra.mxu0 %v302
    %638 = vmatprep.subr.bf16.mxu0 %v301
    %639 = vmatpush1.bf16.msra.mxu0 %v300
    %640 = vmatprep.subr.bf16.mxu0 0
    %641 = vmatpush2.bf16.msra.mxu0 0
    %642 = vmatprep.subr.bf16.mxu0 0
    %643 = vmatpush2.bf16.msra.mxu0 0
    %644 = vmatprep.subr.bf16.mxu0 0
    %645 = vmatpush2.bf16.msra.mxu0 0
    %646 = vmatprep.subr.bf16.mxu0 0
    %647 = vmatpush2.bf16.msra.mxu0 0
    %648 = vmatprep.subr.bf16.mxu0 0
    %649 = vmatpush2.bf16.msra.mxu0 0
    %650 = vmatprep.subr.bf16.mxu0 0
    %651 = vmatpush2.bf16.msra.mxu0 0
    %652 = vmatprep.subr.bf16.mxu0 0
    %653 = vmatpush2.bf16.msra.mxu0 0
    %654 = vmatprep.subr.bf16.mxu0 0
    %655 = vmatpush2.bf16.msra.mxu0 0
    %656 = vmatprep.mubr.bf16.mxu0 0
    %657 = vmatmul.mubr.bf16.gmra.mxu0 %v622
    %v658 = vpop.f32.mrf.mxu0
    %v659 = vadd.f32 %v616, %v658
    %v660 = vpop.f32.mrf.mxu0
    %v661 = vadd.f32 %v617, %v660
    %v662 = vpop.f32.mrf.mxu0
    %v663 = vpop.f32.mrf.mxu0
    %664 = vdwg.mxu0
    %v665 = vxor.u32 %v659, 2147483648
    %v666 = vxor.u32 %v661, 2147483648
    %v667 = vmul.f32 %v665, 1.442695
    %v668 = vpow.pop %v667
    %v669 = vmul.f32 %v666, 1.442695
    %v670 = vpow.pop %v669
    %v671 = vadd.f32 %v668, 1.0
    %v672 = vadd.f32 %v670, 1.0
    %v673 = vrcp.pop %v671
    %v674 = vmul.f32 1.0, %v673
    %v675 = vrcp.pop %v672
    %v676 = vmul.f32 1.0, %v675
    %v677 = vmul.f32 %v676, 2.0
    %v678 = vsub.f32 %v677, 1.0
    %v679 = vmul.f32 %v674, %v609
    %v680 = vmul.f32 %v674, %v678
    %682 = vrot.lane.b32.xlu0 %v680, 64
    %v683 = vpop.permute.xlu0 %682
    %v685 = vadd.f32 %v679, %v683
    %v686 = vtanh.pop %v685
    %v687 = vmul.f32 %v676, %v686
    %v688 = vpack.c.bf16 %v687, %v687
    %s689 = smul.u32 6, 2
    %s690 = smul.addr %s689, 8
    %s691 = scalar_lea.vmem [#allocation2], %s690
    %v692 = vld [vmem:[%s691] sm:$0xff]
    %v693 = vld [vmem:[%s691 + $0x8] sm:$0xff]
    %695 = vrot.lane.b32.xlu0 %v688, 64
    %v696 = vpop.permute.xlu0 %695
    %v698 = vsel %vm316, %v696, 0
    %700 = vmatprep.subr.bf16.mxu0 0
    %701 = vmatpush1.bf16.msra.mxu0 0
    %702 = vmatprep.subr.bf16.mxu0 0
    %703 = vmatpush1.bf16.msra.mxu0 0
    %704 = vmatprep.subr.bf16.mxu0 0
    %705 = vmatpush1.bf16.msra.mxu0 0
    %706 = vmatprep.subr.bf16.mxu0 0
    %707 = vmatpush1.bf16.msra.mxu0 0
    %708 = vmatprep.subr.bf16.mxu0 %v307
    %709 = vmatpush1.bf16.msra.mxu0 %v306
    %710 = vmatprep.subr.bf16.mxu0 %v305
    %711 = vmatpush1.bf16.msra.mxu0 %v304
    %712 = vmatprep.subr.bf16.mxu0 %v303
    %713 = vmatpush1.bf16.msra.mxu0 %v302
    %714 = vmatprep.subr.bf16.mxu0 %v301
    %715 = vmatpush1.bf16.msra.mxu0 %v300
    %716 = vmatprep.subr.bf16.mxu0 0
    %717 = vmatpush2.bf16.msra.mxu0 0
    %718 = vmatprep.subr.bf16.mxu0 0
    %719 = vmatpush2.bf16.msra.mxu0 0
    %720 = vmatprep.subr.bf16.mxu0 0
    %721 = vmatpush2.bf16.msra.mxu0 0
    %722 = vmatprep.subr.bf16.mxu0 0
    %723 = vmatpush2.bf16.msra.mxu0 0
    %724 = vmatprep.subr.bf16.mxu0 0
    %725 = vmatpush2.bf16.msra.mxu0 0
    %726 = vmatprep.subr.bf16.mxu0 0
    %727 = vmatpush2.bf16.msra.mxu0 0
    %728 = vmatprep.subr.bf16.mxu0 0
    %729 = vmatpush2.bf16.msra.mxu0 0
    %730 = vmatprep.subr.bf16.mxu0 0
    %731 = vmatpush2.bf16.msra.mxu0 0
    %732 = vmatprep.mubr.bf16.mxu0 0
    %733 = vmatmul.mubr.bf16.gmra.mxu0 %v698
    %v734 = vpop.f32.mrf.mxu0
    %v735 = vadd.f32 %v692, %v734
    %v736 = vpop.f32.mrf.mxu0
    %v737 = vadd.f32 %v693, %v736
    %v738 = vpop.f32.mrf.mxu0
    %v739 = vpop.f32.mrf.mxu0
    %740 = vdwg.mxu0
    %v741 = vxor.u32 %v735, 2147483648
    %v742 = vxor.u32 %v737, 2147483648
    %v743 = vmul.f32 %v741, 1.442695
    %v744 = vpow.pop %v743
    %v745 = vmul.f32 %v742, 1.442695
    %v746 = vpow.pop %v745
    %v747 = vadd.f32 %v744, 1.0
    %v748 = vadd.f32 %v746, 1.0
    %v749 = vrcp.pop %v747
    %v750 = vmul.f32 1.0, %v749
    %v751 = vrcp.pop %v748
    %v752 = vmul.f32 1.0, %v751
    %v753 = vmul.f32 %v752, 2.0
    %v754 = vsub.f32 %v753, 1.0
    %v755 = vmul.f32 %v750, %v685
    %v756 = vmul.f32 %v750, %v754
    %758 = vrot.lane.b32.xlu0 %v756, 64
    %v759 = vpop.permute.xlu0 %758
    %v761 = vadd.f32 %v755, %v759
    %v762 = vtanh.pop %v761
    %v763 = vmul.f32 %v752, %v762
    %v764 = vpack.c.bf16 %v763, %v763
    %s765 = smul.u32 7, 2
    %s766 = smul.addr %s765, 8
    %s767 = scalar_lea.vmem [#allocation2], %s766
    %v768 = vld [vmem:[%s767] sm:$0xff]
    %v769 = vld [vmem:[%s767 + $0x8] sm:$0xff]
    %771 = vrot.lane.b32.xlu0 %v764, 64
    %v772 = vpop.permute.xlu0 %771
    %v774 = vsel %vm316, %v772, 0
    %776 = vmatprep.subr.bf16.mxu0 0
    %777 = vmatpush1.bf16.msra.mxu0 0
    %778 = vmatprep.subr.bf16.mxu0 0
    %779 = vmatpush1.bf16.msra.mxu0 0
    %780 = vmatprep.subr.bf16.mxu0 0
    %781 = vmatpush1.bf16.msra.mxu0 0
    %782 = vmatprep.subr.bf16.mxu0 0
    %783 = vmatpush1.bf16.msra.mxu0 0
    %784 = vmatprep.subr.bf16.mxu0 %v307
    %785 = vmatpush1.bf16.msra.mxu0 %v306
    %786 = vmatprep.subr.bf16.mxu0 %v305
    %787 = vmatpush1.bf16.msra.mxu0 %v304
    %788 = vmatprep.subr.bf16.mxu0 %v303
    %789 = vmatpush1.bf16.msra.mxu0 %v302
    %790 = vmatprep.subr.bf16.mxu0 %v301
    %791 = vmatpush1.bf16.msra.mxu0 %v300
    %792 = vmatprep.subr.bf16.mxu0 0
    %793 = vmatpush2.bf16.msra.mxu0 0
    %794 = vmatprep.subr.bf16.mxu0 0
    %795 = vmatpush2.bf16.msra.mxu0 0
    %796 = vmatprep.subr.bf16.mxu0 0
    %797 = vmatpush2.bf16.msra.mxu0 0
    %798 = vmatprep.subr.bf16.mxu0 0
    %799 = vmatpush2.bf16.msra.mxu0 0
    %800 = vmatprep.subr.bf16.mxu0 0
    %801 = vmatpush2.bf16.msra.mxu0 0
    %802 = vmatprep.subr.bf16.mxu0 0
    %803 = vmatpush2.bf16.msra.mxu0 0
    %804 = vmatprep.subr.bf16.mxu0 0
    %805 = vmatpush2.bf16.msra.mxu0 0
    %806 = vmatprep.subr.bf16.mxu0 0
    %807 = vmatpush2.bf16.msra.mxu0 0
    %808 = vmatprep.mubr.bf16.mxu0 0
    %809 = vmatmul.mubr.bf16.gmra.mxu0 %v774
    %v810 = vpop.f32.mrf.mxu0
    %v811 = vadd.f32 %v768, %v810
    %v812 = vpop.f32.mrf.mxu0
    %v813 = vadd.f32 %v769, %v812
    %v814 = vpop.f32.mrf.mxu0
    %v815 = vpop.f32.mrf.mxu0
    %816 = vdwg.mxu0
    %v817 = vxor.u32 %v811, 2147483648
    %v818 = vxor.u32 %v813, 2147483648
    %v819 = vmul.f32 %v817, 1.442695
    %v820 = vpow.pop %v819
    %v821 = vmul.f32 %v818, 1.442695
    %v822 = vpow.pop %v821
    %v823 = vadd.f32 %v820, 1.0
    %v824 = vadd.f32 %v822, 1.0
    %v825 = vrcp.pop %v823
    %v826 = vmul.f32 1.0, %v825
    %v827 = vrcp.pop %v824
    %v828 = vmul.f32 1.0, %v827
    %v829 = vmul.f32 %v828, 2.0
    %v830 = vsub.f32 %v829, 1.0
    %v831 = vmul.f32 %v826, %v761
    %v832 = vmul.f32 %v826, %v830
    %834 = vrot.lane.b32.xlu0 %v832, 64
    %v835 = vpop.permute.xlu0 %834
    %v837 = vadd.f32 %v831, %v835
    %v838 = vtanh.pop %v837
    %v839 = vmul.f32 %v828, %v838
    %v840 = vpack.c.bf16 %v839, %v839
    %v841 = vld [vmem:[%s4] sm:$0x3]
    %v843 = vlaneseq
    %v844 = vshrl.u32 %v843, 7
    %v845 = vsub.s32 0, %v844
    %v846 = vrot.slane %v841, %v845
    %v847 = vlaneseq
    %v848 = vshrl.u32 %v847, 7
    %v849 = vsub.s32 1, %v848
    %v850 = vrot.slane %v841, %v849
    %854 = vrot.lane.b32.xlu0 %v840, 64
    %v855 = vpop.permute.xlu0 %854
    %v857 = vsel %vm316, %v855, 0
    %859 = vmatprep.subr.bf16.mxu0 0
    %860 = vmatpush1.bf16.msra.mxu0 0
    %861 = vmatprep.subr.bf16.mxu0 0
    %862 = vmatpush1.bf16.msra.mxu0 0
    %863 = vmatprep.subr.bf16.mxu0 0
    %864 = vmatpush1.bf16.msra.mxu0 0
    %865 = vmatprep.subr.bf16.mxu0 0
    %866 = vmatpush1.bf16.msra.mxu0 0
    %867 = vmatprep.subr.bf16.mxu0 %v307
    %868 = vmatpush1.bf16.msra.mxu0 %v306
    %869 = vmatprep.subr.bf16.mxu0 %v305
    %870 = vmatpush1.bf16.msra.mxu0 %v304
    %871 = vmatprep.subr.bf16.mxu0 %v303
    %872 = vmatpush1.bf16.msra.mxu0 %v302
    %873 = vmatprep.subr.bf16.mxu0 %v301
    %874 = vmatpush1.bf16.msra.mxu0 %v300
    %875 = vmatprep.subr.bf16.mxu0 0
    %876 = vmatpush2.bf16.msra.mxu0 0
    %877 = vmatprep.subr.bf16.mxu0 0
    %878 = vmatpush2.bf16.msra.mxu0 0
    %879 = vmatprep.subr.bf16.mxu0 0
    %880 = vmatpush2.bf16.msra.mxu0 0
    %881 = vmatprep.subr.bf16.mxu0 0
    %882 = vmatpush2.bf16.msra.mxu0 0
    %883 = vmatprep.subr.bf16.mxu0 0
    %884 = vmatpush2.bf16.msra.mxu0 0
    %885 = vmatprep.subr.bf16.mxu0 0
    %886 = vmatpush2.bf16.msra.mxu0 0
    %887 = vmatprep.subr.bf16.mxu0 0
    %888 = vmatpush2.bf16.msra.mxu0 0
    %889 = vmatprep.subr.bf16.mxu0 0
    %890 = vmatpush2.bf16.msra.mxu0 0
    %891 = vmatprep.mubr.bf16.mxu0 0
    %892 = vmatmul.mubr.bf16.gmra.mxu0 %v857
    %v893 = vpop.f32.mrf.mxu0
    %v894 = vadd.f32 %v846, %v893
    %v895 = vpop.f32.mrf.mxu0
    %v896 = vadd.f32 %v850, %v895
    %v897 = vpop.f32.mrf.mxu0
    %v898 = vpop.f32.mrf.mxu0
    %899 = vdwg.mxu0
    %v900 = vxor.u32 %v894, 2147483648
    %v901 = vxor.u32 %v896, 2147483648
    %v902 = vmul.f32 %v900, 1.442695
    %v903 = vpow.pop %v902
    %v904 = vmul.f32 %v901, 1.442695
    %v905 = vpow.pop %v904
    %v906 = vadd.f32 %v903, 1.0
    %v907 = vadd.f32 %v905, 1.0
    %v908 = vrcp.pop %v906
    %v909 = vmul.f32 1.0, %v908
    %v910 = vrcp.pop %v907
    %v911 = vmul.f32 1.0, %v910
    %v912 = vmul.f32 %v911, 2.0
    %v913 = vsub.f32 %v912, 1.0
    %v914 = vmul.f32 %v909, %v837
    %v915 = vmul.f32 %v909, %v913
    %917 = vrot.lane.b32.xlu0 %v915, 64
    %v918 = vpop.permute.xlu0 %917
    %v920 = vadd.f32 %v914, %v918
    %v921 = vtanh.pop %v920
    %v922 = vmul.f32 %v911, %v921
    %v923 = vld [vmem:[%s5] sm:$0xff]
    %v924 = vld [vmem:[%s5 + $0x8] sm:$0xff]
    %v925 = vld [vmem:[%s5 + $0x10] sm:$0xff]
    %v926 = vld [vmem:[%s5 + $0x18] sm:$0xff]
    %v927 = vld [vmem:[%s6] sm:$0x1]
    %v929 = vlaneseq
    %v930 = vshrl.u32 %v929, 7
    %v931 = vsub.s32 0, %v930
    %v932 = vrot.slane %v927, %v931
    %935 = vrot.lane.b32.xlu0 %v922, 32
    %v936 = vpop.permute.xlu0 %935
    %vm937 = vcmask 261120
    %v938 = vsel %vm937, %v936, 0
    %940 = vmatprep.subr.mxu0 0.0
    %941 = vmatpush1.msra.mxu0 0.0
    %942 = vmatprep.subr.mxu0 0.0
    %943 = vmatpush1.msra.mxu0 0.0
    %944 = vmatprep.subr.mxu0 0.0
    %945 = vmatpush1.msra.mxu0 0.0
    %946 = vmatprep.subr.mxu0 0.0
    %947 = vmatpush1.msra.mxu0 0.0
    %948 = vmatprep.subr.mxu0 0.0
    %949 = vmatpush1.msra.mxu0 0.0
    %950 = vmatprep.subr.mxu0 0.0
    %951 = vmatpush1.msra.mxu0 0.0
    %952 = vmatprep.subr.mxu0 0.0
    %953 = vmatpush1.msra.mxu0 0.0
    %954 = vmatprep.subr.mxu0 0.0
    %955 = vmatpush1.msra.mxu0 0.0
    %956 = vmatprep.subr.mxu0 0.0
    %957 = vmatpush1.msra.mxu0 0.0
    %958 = vmatprep.subr.mxu0 0.0
    %959 = vmatpush1.msra.mxu0 0.0
    %960 = vmatprep.subr.mxu0 0.0
    %961 = vmatpush1.msra.mxu0 0.0
    %962 = vmatprep.subr.mxu0 0.0
    %963 = vmatpush1.msra.mxu0 0.0
    %964 = vmatprep.subr.mxu0 0.0
    %965 = vmatpush1.msra.mxu0 %v926
    %966 = vmatprep.subr.mxu0 0.0
    %967 = vmatpush1.msra.mxu0 %v925
    %968 = vmatprep.subr.mxu0 0.0
    %969 = vmatpush1.msra.mxu0 %v924
    %970 = vmatprep.subr.mxu0 0.0
    %971 = vmatpush1.msra.mxu0 %v923
    %972 = vmatprep.subr.mxu0 0.0
    %973 = vmatpush2.msra.mxu0 0.0
    %974 = vmatprep.subr.mxu0 0.0
    %975 = vmatpush2.msra.mxu0 0.0
    %976 = vmatprep.subr.mxu0 0.0
    %977 = vmatpush2.msra.mxu0 0.0
    %978 = vmatprep.subr.mxu0 0.0
    %979 = vmatpush2.msra.mxu0 0.0
    %980 = vmatprep.subr.mxu0 0.0
    %981 = vmatpush2.msra.mxu0 0.0
    %982 = vmatprep.subr.mxu0 0.0
    %983 = vmatpush2.msra.mxu0 0.0
    %984 = vmatprep.subr.mxu0 0.0
    %985 = vmatpush2.msra.mxu0 0.0
    %986 = vmatprep.subr.mxu0 0.0
    %987 = vmatpush2.msra.mxu0 0.0
    %988 = vmatprep.subr.mxu0 0.0
    %989 = vmatpush2.msra.mxu0 0.0
    %990 = vmatprep.subr.mxu0 0.0
    %991 = vmatpush2.msra.mxu0 0.0
    %992 = vmatprep.subr.mxu0 0.0
    %993 = vmatpush2.msra.mxu0 0.0
    %994 = vmatprep.subr.mxu0 0.0
    %995 = vmatpush2.msra.mxu0 0.0
    %996 = vmatprep.subr.mxu0 0.0
    %997 = vmatpush2.msra.mxu0 0.0
    %998 = vmatprep.subr.mxu0 0.0
    %999 = vmatpush2.msra.mxu0 0.0
    %1000 = vmatprep.subr.mxu0 0.0
    %1001 = vmatpush2.msra.mxu0 0.0
    %1002 = vmatprep.subr.mxu0 0.0
    %1003 = vmatpush2.msra.mxu0 0.0
    %1004 = vmatprep.mubr.f32.mxu0 0.0
    %1005 = vmatmul.mubr.f32.gmra.mxu0 %v938
    %v1006 = vpop.f32.mrf.mxu0
    %v1007 = vadd.f32 %v932, %v1006
    %v1008 = vpop.f32.mrf.mxu0
    %1009 = vdwg.mxu0
    %v1010 = vxor.u32 %v1007, 2147483648
    %v1011 = vmul.f32 %v1010, 1.442695
    %v1012 = vpow.pop %v1011
    %v1013 = vadd.f32 %v1012, 1.0
    %v1014 = vrcp.pop %v1013
    %v1015 = vmul.f32 1.0, %v1014
    %v1016 = vld [vmem:[%s7] sm:$0xff]
    %v1017 = vld [vmem:[%s7 + $0x8] sm:$0x7f]
    %v1018 = vld [vmem:[%s8] sm:$0x1]
    %v1020 = vlaneseq
    %v1021 = vshrl.u32 %v1020, 7
    %v1022 = vsub.s32 0, %v1021
    %v1023 = vrot.slane %v1018, %v1022
    %vm1025 = vcmask 121856
    %v1027 = vsel %vm1025, %v1015, 0
    %vm1029 = vcmask 1046528
    %v1031 = vsel %vm1029, %v1017, 0
    %1033 = vmatprep.subr.mxu0 0.0
    %1034 = vmatpush1.msra.mxu0 0.0
    %1035 = vmatprep.subr.mxu0 0.0
    %1036 = vmatpush1.msra.mxu0 0.0
    %1037 = vmatprep.subr.mxu0 0.0
    %1038 = vmatpush1.msra.mxu0 0.0
    %1039 = vmatprep.subr.mxu0 0.0
    %1040 = vmatpush1.msra.mxu0 0.0
    %1041 = vmatprep.subr.mxu0 0.0
    %1042 = vmatpush1.msra.mxu0 0.0
    %1043 = vmatprep.subr.mxu0 0.0
    %1044 = vmatpush1.msra.mxu0 0.0
    %1045 = vmatprep.subr.mxu0 0.0
    %1046 = vmatpush1.msra.mxu0 0.0
    %1047 = vmatprep.subr.mxu0 0.0
    %1048 = vmatpush1.msra.mxu0 0.0
    %1049 = vmatprep.subr.mxu0 0.0
    %1050 = vmatpush1.msra.mxu0 0.0
    %1051 = vmatprep.subr.mxu0 0.0
    %1052 = vmatpush1.msra.mxu0 0.0
    %1053 = vmatprep.subr.mxu0 0.0
    %1054 = vmatpush1.msra.mxu0 0.0
    %1055 = vmatprep.subr.mxu0 0.0
    %1056 = vmatpush1.msra.mxu0 0.0
    %1057 = vmatprep.subr.mxu0 0.0
    %1058 = vmatpush1.msra.mxu0 0.0
    %1059 = vmatprep.subr.mxu0 0.0
    %1060 = vmatpush1.msra.mxu0 0.0
    %1061 = vmatprep.subr.mxu0 0.0
    %1062 = vmatpush1.msra.mxu0 %v1031
    %1063 = vmatprep.subr.mxu0 0.0
    %1064 = vmatpush1.msra.mxu0 %v1016
    %1065 = vmatprep.subr.mxu0 0.0
    %1066 = vmatpush2.msra.mxu0 0.0
    %1067 = vmatprep.subr.mxu0 0.0
    %1068 = vmatpush2.msra.mxu0 0.0
    %1069 = vmatprep.subr.mxu0 0.0
    %1070 = vmatpush2.msra.mxu0 0.0
    %1071 = vmatprep.subr.mxu0 0.0
    %1072 = vmatpush2.msra.mxu0 0.0
    %1073 = vmatprep.subr.mxu0 0.0
    %1074 = vmatpush2.msra.mxu0 0.0
    %1075 = vmatprep.subr.mxu0 0.0
    %1076 = vmatpush2.msra.mxu0 0.0
    %1077 = vmatprep.subr.mxu0 0.0
    %1078 = vmatpush2.msra.mxu0 0.0
    %1079 = vmatprep.subr.mxu0 0.0
    %1080 = vmatpush2.msra.mxu0 0.0
    %1081 = vmatprep.subr.mxu0 0.0
    %1082 = vmatpush2.msra.mxu0 0.0
    %1083 = vmatprep.subr.mxu0 0.0
    %1084 = vmatpush2.msra.mxu0 0.0
    %1085 = vmatprep.subr.mxu0 0.0
    %1086 = vmatpush2.msra.mxu0 0.0
    %1087 = vmatprep.subr.mxu0 0.0
    %1088 = vmatpush2.msra.mxu0 0.0
    %1089 = vmatprep.subr.mxu0 0.0
    %1090 = vmatpush2.msra.mxu0 0.0
    %1091 = vmatprep.subr.mxu0 0.0
    %1092 = vmatpush2.msra.mxu0 0.0
    %1093 = vmatprep.subr.mxu0 0.0
    %1094 = vmatpush2.msra.mxu0 0.0
    %1095 = vmatprep.subr.mxu0 0.0
    %1096 = vmatpush2.msra.mxu0 0.0
    %1097 = vmatprep.mubr.f32.mxu0 0.0
    %1098 = vmatmul.mubr.f32.gmra.mxu0 %v1027
    %v1099 = vpop.f32.mrf.mxu0
    %v1100 = vadd.f32 %v1023, %v1099
    %v1101 = vpop.f32.mrf.mxu0
    %1102 = vdwg.mxu0
    %v1103 = vxor.u32 %v1100, 2147483648
    %v1104 = vmul.f32 %v1103, 1.442695
    %v1105 = vpow.pop %v1104
    %v1106 = vadd.f32 %v1105, 1.0
    %v1107 = vrcp.pop %v1106
    %v1108 = vmul.f32 1.0, %v1107
    %v1109 = vld [vmem:[%s9] sm:$0xff]
    %v1110 = vld [vmem:[%s9 + $0x8] sm:$0x7f]
    %v1111 = vld [vmem:[%s10] sm:$0x1]
    %v1113 = vlaneseq
    %v1114 = vshrl.u32 %v1113, 7
    %v1115 = vsub.s32 0, %v1114
    %v1116 = vrot.slane %v1111, %v1115
    %v1119 = vsel %vm1025, %v1108, 0
    %v1122 = vsel %vm1029, %v1110, 0
    %1124 = vmatprep.subr.mxu0 0.0
    %1125 = vmatpush1.msra.mxu0 0.0
    %1126 = vmatprep.subr.mxu0 0.0
    %1127 = vmatpush1.msra.mxu0 0.0
    %1128 = vmatprep.subr.mxu0 0.0
    %1129 = vmatpush1.msra.mxu0 0.0
    %1130 = vmatprep.subr.mxu0 0.0
    %1131 = vmatpush1.msra.mxu0 0.0
    %1132 = vmatprep.subr.mxu0 0.0
    %1133 = vmatpush1.msra.mxu0 0.0
    %1134 = vmatprep.subr.mxu0 0.0
    %1135 = vmatpush1.msra.mxu0 0.0
    %1136 = vmatprep.subr.mxu0 0.0
    %1137 = vmatpush1.msra.mxu0 0.0
    %1138 = vmatprep.subr.mxu0 0.0
    %1139 = vmatpush1.msra.mxu0 0.0
    %1140 = vmatprep.subr.mxu0 0.0
    %1141 = vmatpush1.msra.mxu0 0.0
    %1142 = vmatprep.subr.mxu0 0.0
    %1143 = vmatpush1.msra.mxu0 0.0
    %1144 = vmatprep.subr.mxu0 0.0
    %1145 = vmatpush1.msra.mxu0 0.0
    %1146 = vmatprep.subr.mxu0 0.0
    %1147 = vmatpush1.msra.mxu0 0.0
    %1148 = vmatprep.subr.mxu0 0.0
    %1149 = vmatpush1.msra.mxu0 0.0
    %1150 = vmatprep.subr.mxu0 0.0
    %1151 = vmatpush1.msra.mxu0 0.0
    %1152 = vmatprep.subr.mxu0 0.0
    %1153 = vmatpush1.msra.mxu0 %v1122
    %1154 = vmatprep.subr.mxu0 0.0
    %1155 = vmatpush1.msra.mxu0 %v1109
    %1156 = vmatprep.subr.mxu0 0.0
    %1157 = vmatpush2.msra.mxu0 0.0
    %1158 = vmatprep.subr.mxu0 0.0
    %1159 = vmatpush2.msra.mxu0 0.0
    %1160 = vmatprep.subr.mxu0 0.0
    %1161 = vmatpush2.msra.mxu0 0.0
    %1162 = vmatprep.subr.mxu0 0.0
    %1163 = vmatpush2.msra.mxu0 0.0
    %1164 = vmatprep.subr.mxu0 0.0
    %1165 = vmatpush2.msra.mxu0 0.0
    %1166 = vmatprep.subr.mxu0 0.0
    %1167 = vmatpush2.msra.mxu0 0.0
    %1168 = vmatprep.subr.mxu0 0.0
    %1169 = vmatpush2.msra.mxu0 0.0
    %1170 = vmatprep.subr.mxu0 0.0
    %1171 = vmatpush2.msra.mxu0 0.0
    %1172 = vmatprep.subr.mxu0 0.0
    %1173 = vmatpush2.msra.mxu0 0.0
    %1174 = vmatprep.subr.mxu0 0.0
    %1175 = vmatpush2.msra.mxu0 0.0
    %1176 = vmatprep.subr.mxu0 0.0
    %1177 = vmatpush2.msra.mxu0 0.0
    %1178 = vmatprep.subr.mxu0 0.0
    %1179 = vmatpush2.msra.mxu0 0.0
    %1180 = vmatprep.subr.mxu0 0.0
    %1181 = vmatpush2.msra.mxu0 0.0
    %1182 = vmatprep.subr.mxu0 0.0
    %1183 = vmatpush2.msra.mxu0 0.0
    %1184 = vmatprep.subr.mxu0 0.0
    %1185 = vmatpush2.msra.mxu0 0.0
    %1186 = vmatprep.subr.mxu0 0.0
    %1187 = vmatpush2.msra.mxu0 0.0
    %1188 = vmatprep.mubr.f32.mxu0 0.0
    %1189 = vmatmul.mubr.f32.gmra.mxu0 %v1119
    %v1190 = vpop.f32.mrf.mxu0
    %v1191 = vadd.f32 %v1116, %v1190
    %v1192 = vpop.f32.mrf.mxu0
    %1193 = vdwg.mxu0
    %vm1194 = vcmask 64512
    %1195 = vst.msk [vmem:[#allocation3] sm:$0xff] %vm1194, %v1191
    // Predicated region
    $region46: #{tpu_custom_call.1} parent=1 // pred_check
      _
    $region47: #{tpu_custom_call.1} parent=1 // pred_check_branch
      %1197 = sbr.rel (0) target = $region49
    $region48: #{tpu_custom_call.1} parent=1 // pred_region
      %s1199 = ssub.s32 128, 128
      %1200 = vsyncadd [#allocation4], %s1199
      %s1202 = sshll.u32 [#allocation3], 4
      %s1203 = int_to_ptr.vmem [resolvable:$true] %s1202
      %1205 = dma.vmem_to_hbm [thread:$0]  %s1203, 128, %s11, [#allocation4]
    $region49: #{tpu_custom_call.1} parent=1 // pred_fallthru
      _
    // Predicated region
    $region50: #{tpu_custom_call.1} parent=1 // pred_check
      _
    $region51: #{tpu_custom_call.1} parent=1 // pred_check_branch
      %1207 = sbr.rel (0) target = $region53
    $region52: #{tpu_custom_call.1} parent=1 // pred_region
      %1208 = dma.done [#allocation4], 128
    $region53: #{tpu_custom_call.1} parent=1 // pred_fallthru
      _
    %1209 = vsyncpa [#allocation4], 1

</llo_original>
